<compile_context>
chip_gen: v7x
topology: tpu7x:2x2x1
jax: 0.10.0
libtpu: 0.0.40
codegen_flags: <defaults>
</compile_context>

<pallas_src>
from functools import partial

import jax
import jax.numpy as jnp
from jax.experimental import pallas as pl
from jax.experimental.pallas import tpu as pltpu

LANE = 128


def _vmem_budget_bytes():
    """~85% of per-core VMEM (leaves compiler headroom); safe fallback if query fails."""
    try:
        cap = int(pltpu.get_tpu_info().vmem_capacity_bytes)
    except Exception:
        cap = 64 * 1024 * 1024
    return max(32 * 1024 * 1024, min(int(cap * 0.85), 112 * 1024 * 1024))


# -----------------------------------------------------------------------------
# Path 1: fully VMEM-resident fused kernel (A read from HBM exactly once)
# -----------------------------------------------------------------------------
def _appnp_fused_kernel(x_ref, w1_ref, b1_ref, w2_ref, b2_ref, a_hbm_ref,
                        out_ref, a_vmem, a_sem, *, alpha, n_propagation):
    # Overlap the dominant A HBM->VMEM DMA with the MLP feature transform.
    a_copy = pltpu.make_async_copy(a_hbm_ref, a_vmem, a_sem)
    a_copy.start()

    # transform_features (eval: Dropout == identity); bf16 x bf16 -> f32 on the MXU.
    h = jnp.dot(x_ref[...], w1_ref[...], preferred_element_type=jnp.float32)
    h = jnp.maximum(h + b1_ref[...], 0.0).astype(jnp.bfloat16)
    h0 = jnp.dot(h, w2_ref[...], preferred_element_type=jnp.float32) + b2_ref[...]

    a_copy.wait()
    a = a_vmem[...]                                           # (N, N) bf16, 0/1 exact

    # Degree via an MXU rowsum: no NxN f32 temporary, no XLU lane-reduce.
    ones = jnp.ones((a.shape[1], LANE), jnp.bfloat16)
    rowsum = jnp.dot(a, ones, preferred_element_type=jnp.float32)[:, :1]
    rowsum = jnp.maximum(rowsum, 1.0)                         # guard all-zero rows
    d = jax.lax.rsqrt(rowsum)                                 # (N, 1) f32

    # A_hat @ L == d * (A @ (d * L)); carry the iterate in d-scaled space.
    c = jnp.float32(1.0 - alpha) * d * d
    g = jnp.float32(alpha) * (d * h0)
    m0 = d * h0

    def body(_, m):
        z = jnp.dot(a, m.astype(jnp.bfloat16), preferred_element_type=jnp.float32)
        return c * z + g

    m = jax.lax.fori_loop(0, n_propagation, body, m0, unroll=True)
    out_ref[...] = (jnp.sqrt(rowsum) * m).astype(out_ref.dtype)


# -----------------------------------------------------------------------------
# Path 2: streamed row-tiled kernel (A never fully resident)
#   grid = (n_propagation + 1, N // rows); step 0 = MLP + degree prep, steps 1..P
#   propagate.  Full d-scaled logits live in a ping-pong VMEM scratch.
# -----------------------------------------------------------------------------
def _appnp_streamed_kernel(x_ref, w1_ref, b1_ref, w2_ref, b2_ref, a_ref, out_ref,
                           m_a, m_b, c_buf, g_buf, rs_buf, *, alpha):
    s = pl.program_id(0)
    r = pl.program_id(1)
    rows = a_ref.shape[0]
    row0 = pl.multiple_of(r * rows, rows)
    rows_sl = pl.ds(row0, rows)

    @pl.when(s == 0)
    def _prep():
        h = jnp.dot(x_ref[...], w1_ref[...], preferred_element_type=jnp.float32)
        h = jnp.maximum(h + b1_ref[...], 0.0).astype(jnp.bfloat16)
        h0 = jnp.dot(h, w2_ref[...], preferred_element_type=jnp.float32) + b2_ref[...]

        ones = jnp.ones((a_ref.shape[1], LANE), jnp.bfloat16)
        rowsum = jnp.dot(a_ref[...], ones, preferred_element_type=jnp.float32)[:, :1]
        rowsum = jnp.maximum(rowsum, 1.0)
        d = jax.lax.rsqrt(rowsum)

        rs_buf[rows_sl, :] = rowsum
        c_buf[rows_sl, :] = jnp.float32(1.0 - alpha) * d * d
        g_buf[rows_sl, :] = jnp.float32(alpha) * (d * h0)
        m_a[rows_sl, :] = d * h0                       # M_0 rows (d-scaled local logits)
        out_ref[...] = h0.astype(out_ref.dtype)        # valid result for n_propagation==0

    @pl.when(s > 0)
    def _step():
        a_blk = a_ref[...]                             # (rows, N) bf16
        c_rows = c_buf[rows_sl, :]
        g_rows = g_buf[rows_sl, :]
        unscale = jnp.sqrt(rs_buf[rows_sl, :])

        def one_step(src_ref, dst_ref):
            z = jnp.dot(a_blk, src_ref[...].astype(jnp.bfloat16),
                        preferred_element_type=jnp.float32)
            m_new = c_rows * z + g_rows
            dst_ref[rows_sl, :] = m_new
            out_ref[...] = (unscale * m_new).astype(out_ref.dtype)

        @pl.when(s % 2 == 1)
        def _odd():
            one_step(m_a, m_b)

        @pl.when(s % 2 == 0)
        def _even():
            one_step(m_b, m_a)


# -----------------------------------------------------------------------------
# Python wrapper
# -----------------------------------------------------------------------------
def appnp_forward(X, A, params, *, alpha=0.1, n_propagation=5,
                  force_streamed=False, rows=512):
    w1, b1, w2, b2 = params
    N, F = X.shape
    H = w1.shape[1]
    C = w2.shape[1]
    CP = max(LANE, ((C + LANE - 1) // LANE) * LANE)            # lane-dense class dim

    # Pad the output projection so working logits are (N, CP) lane-dense.
    w2p = jnp.zeros((H, CP), jnp.float32).at[:, :C].set(w2)
    b2p = jnp.zeros((1, CP), jnp.float32).at[:, :C].set(b2.reshape(1, -1))

    budget = _vmem_budget_bytes()
    # Rough peak-VMEM estimate of the fused resident path.
    fused_bytes = (2 * N * N                                   # A (bf16) scratch
                   + 2 * N * F + 4 * N * H + 10 * N * CP + 2 * N * LANE
                   + 2 * F * H + 2 * H * CP + 4 * (H + CP))
    use_fused = (not force_streamed) and fused_bytes <= int(0.75 * budget)

    xb = X.astype(jnp.bfloat16)
    w1b = w1.astype(jnp.bfloat16)
    w2b = w2p.astype(jnp.bfloat16)
    b1r = b1.reshape(1, -1).astype(jnp.float32)
    a_bf = A.astype(jnp.bfloat16)                              # 0/1 adjacency exact in bf16

    if use_fused:
        vmem = pl.BlockSpec(memory_space=pltpu.MemorySpace.VMEM)
        out = pl.pallas_call(
            partial(_appnp_fused_kernel, alpha=float(alpha),
                    n_propagation=int(n_propagation)),
            out_shape=jax.ShapeDtypeStruct((N, CP), jnp.float32),
            in_specs=[vmem, vmem, vmem, vmem, vmem,
                      pl.BlockSpec(memory_space=pl.ANY)],      # A stays in HBM; manual DMA
            out_specs=vmem,
            scratch_shapes=[pltpu.VMEM((N, N), jnp.bfloat16),
                            pltpu.SemaphoreType.DMA],
            compiler_params=pltpu.CompilerParams(vmem_limit_bytes=budget),
        )(xb, w1b, b1r, w2b, b2p, a_bf)
        return out[:, :C]

    # ---- streamed row-tiled path ---------------------------------------------
    rows = max(128, min(int(rows), 1024))
    NP = -(-N // rows) * rows                                  # pad N to multiple of rows
    pad = NP - N
    if pad:
        xb = jnp.pad(xb, ((0, pad), (0, 0)))
        a_bf = jnp.pad(a_bf, ((0, pad), (0, pad)))

    n_steps = int(n_propagation) + 1
    out = pl.pallas_call(
        partial(_appnp_streamed_kernel, alpha=float(alpha)),
        out_shape=jax.ShapeDtypeStruct((NP, CP), jnp.float32),
        grid=(n_steps, NP // rows),
        in_specs=[
            pl.BlockSpec((rows, F), lambda s, r: (r, 0)),      # X row block
            pl.BlockSpec((F, H), lambda s, r: (0, 0)),         # W1 (resident)
            pl.BlockSpec((1, H), lambda s, r: (0, 0)),         # b1
            pl.BlockSpec((H, CP), lambda s, r: (0, 0)),        # W2 (padded)
            pl.BlockSpec((1, CP), lambda s, r: (0, 0)),        # b2 (padded)
            pl.BlockSpec((rows, NP), lambda s, r: (r, 0)),     # A row block (double-buffered)
        ],
        out_specs=pl.BlockSpec((rows, CP), lambda s, r: (r, 0)),
        scratch_shapes=[
            pltpu.VMEM((NP, CP), jnp.float32),                 # m_a (d-scaled logits, ping)
            pltpu.VMEM((NP, CP), jnp.float32),                 # m_b (pong)
            pltpu.VMEM((NP, 1), jnp.float32),                  # c = (1-alpha)*d^2
            pltpu.VMEM((NP, CP), jnp.float32),                 # g = alpha*d*h0
            pltpu.VMEM((NP, 1), jnp.float32),                  # rowsum (final unscale)
        ],
        compiler_params=pltpu.CompilerParams(
            dimension_semantics=("arbitrary", "arbitrary"),
            vmem_limit_bytes=budget),
    )(xb, w1b, b1r, w2b, b2p, a_bf)
    return out[:N, :C]


# -----------------------------------------------------------------------------
# References
# -----------------------------------------------------------------------------
def appnp_reference(X, A, params, *, alpha, n_propagation, match_kernel=True):
    w1, b1, w2, b2 = params
    if match_kernel:  # same bf16/f32 mix and scaling order as the kernels
        h = jnp.maximum(jnp.dot(X.astype(jnp.bfloat16), w1.astype(jnp.bfloat16),
                                preferred_element_type=jnp.float32) + b1, 0.0)
        h0 = jnp.dot(h.astype(jnp.bfloat16), w2.astype(jnp.bfloat16),
                     preferred_element_type=jnp.float32) + b2
        rowsum = jnp.maximum(A.sum(axis=1, keepdims=True), 1.0)
        d = jax.lax.rsqrt(rowsum)
        a_bf = A.astype(jnp.bfloat16)
        c = (1.0 - alpha) * d * d
        g = alpha * (d * h0)
        m = d * h0
        for _ in range(n_propagation):
            m = c * jnp.dot(a_bf, m.astype(jnp.bfloat16),
                            preferred_element_type=jnp.float32) + g
        return jnp.sqrt(rowsum) * m
    # pure f32 semantics of the original torch module (eval mode)
    h = jnp.maximum(X @ w1 + b1, 0.0)
    h0 = h @ w2 + b2
    d = 1.0 / jnp.sqrt(A.sum(axis=1, keepdims=True))
    a_hat = d * A * d.reshape(1, -1)
    logits = h0
    for _ in range(n_propagation):
        logits = (1.0 - alpha) * (a_hat @ logits) + alpha * h0
    return logits


# -----------------------------------------------------------------------------
# Main
# -----------------------------------------------------------------------------
if __name__ == "__main__":
    F, H, C = 64, 64, 8
    alpha, n_propagation = 0.1, 5

    key = jax.random.PRNGKey(0)
    k_param, k_data = jax.random.split(key)
    k1, k2, k3, k4 = jax.random.split(k_param, 4)
    lim1 = 1.0 / jnp.sqrt(jnp.float32(F))
    lim2 = 1.0 / jnp.sqrt(jnp.float32(H))
    w1 = jax.random.uniform(k1, (F, H), minval=-lim1, maxval=lim1, dtype=jnp.float32)
    b1 = jax.random.uniform(k2, (H,), minval=-lim1, maxval=lim1, dtype=jnp.float32)
    w2 = jax.random.uniform(k3, (H, C), minval=-lim2, maxval=lim2, dtype=jnp.float32)
    b2 = jax.random.uniform(k4, (C,), minval=-lim2, maxval=lim2, dtype=jnp.float32)
    params = (w1, b1, w2, b2)

    def make_graph(k, n):
        kx, ka = jax.random.split(k)
        x = jax.random.normal(kx, (n, F), dtype=jnp.float32)
        a = (jax.random.uniform(ka, (n, n)) < 0.05).astype(jnp.float32)
        a = jnp.maximum(a, a.T)                                # symmetrize
        a = jnp.maximum(a, jnp.eye(n, dtype=jnp.float32))      # self-loops
        return x, a

    kg1, kg2 = jax.random.split(k_data)

    # --- fused (VMEM-resident) path, selected automatically at N=128 -------------
    X1, A1 = make_graph(kg1, 128)
    out1 = appnp_forward(X1, A1, params, alpha=alpha, n_propagation=n_propagation)
    jax.block_until_ready(out1)
    assert out1.shape == (128, C)
    ref1 = appnp_reference(X1, A1, params, alpha=alpha, n_propagation=n_propagation,
                           match_kernel=True)
    ref1_f32 = appnp_reference(X1, A1, params, alpha=alpha, n_propagation=n_propagation,
                               match_kernel=False)
    assert jnp.allclose(out1, ref1, atol=5e-3, rtol=5e-3)
    assert jnp.allclose(out1, ref1_f32, atol=3e-2, rtol=3e-2)

    # --- streamed row-tiled path (forced; exercises multi-block + ping-pong) -----
    X2, A2 = make_graph(kg2, 256)
    out2 = appnp_forward(X2, A2, params, alpha=alpha, n_propagation=n_propagation,
                         force_streamed=True, rows=128)
    jax.block_until_ready(out2)
    assert out2.shape == (256, C)
    ref2 = appnp_reference(X2, A2, params, alpha=alpha, n_propagation=n_propagation,
                           match_kernel=True)
    ref2_f32 = appnp_reference(X2, A2, params, alpha=alpha, n_propagation=n_propagation,
                               match_kernel=False)
    assert jnp.allclose(out2, ref2, atol=5e-3, rtol=5e-3)
    assert jnp.allclose(out2, ref2_f32, atol=3e-2, rtol=3e-2)

    print("KERNEL_OK")
</pallas_src>

<mosaic_0001>
module attributes {stable_mosaic.version = 11 : i64} {
  func.func @_appnp_fused_kernel(%arg0: memref<128x64xbf16, #tpu.memory_space<vmem>>, %arg1: memref<64x64xbf16, #tpu.memory_space<vmem>>, %arg2: memref<1x64xf32, #tpu.memory_space<vmem>>, %arg3: memref<64x128xbf16, #tpu.memory_space<vmem>>, %arg4: memref<1x128xf32, #tpu.memory_space<vmem>>, %arg5: memref<128x128xbf16, #tpu.memory_space<any>>, %arg6: memref<128x128xf32, #tpu.memory_space<vmem>>, %arg7: memref<128x128xbf16, #tpu.memory_space<vmem>>, %arg8: memref<!tpu.dma_semaphore, #tpu.memory_space<semaphore_mem>>) attributes {dimension_semantics = [], scalar_prefetch = 0 : i64, scratch_operands = 2 : i64, tpu.core_type = #tpu.core_type<tc>} {
    tpu.enqueue_dma source(%arg5 : memref<128x128xbf16, #tpu.memory_space<any>>) target(%arg7 : memref<128x128xbf16, #tpu.memory_space<vmem>>) target_semaphore(%arg8 : memref<!tpu.dma_semaphore, #tpu.memory_space<semaphore_mem>>)
    %c0 = arith.constant 0 : index
    %c0_0 = arith.constant 0 : index
    %0 = vector.load %arg0[%c0, %c0_0] : memref<128x64xbf16, #tpu.memory_space<vmem>>, vector<128x64xbf16>
    %c0_1 = arith.constant 0 : index
    %c0_2 = arith.constant 0 : index
    %1 = vector.load %arg1[%c0_1, %c0_2] : memref<64x64xbf16, #tpu.memory_space<vmem>>, vector<64x64xbf16>
    %cst = arith.constant dense<0.000000e+00> : vector<128x64xf32>
    %2 = tpu.matmul %0, %1, %cst {dimension_numbers = #tpu.dot_dimension_numbers<[1], [0], [0], [1], [0, 0, 1, 1], [], []>} : vector<128x64xbf16>, vector<64x64xbf16>, vector<128x64xf32> -> vector<128x64xf32>
    %c0_3 = arith.constant 0 : index
    %c0_4 = arith.constant 0 : index
    %3 = vector.load %arg2[%c0_3, %c0_4] : memref<1x64xf32, #tpu.memory_space<vmem>>, vector<1x64xf32>
    %4 = vector.broadcast %3 : vector<1x64xf32> to vector<128x64xf32>
    %5 = arith.addf %2, %4 : vector<128x64xf32>
    %cst_5 = arith.constant 0.000000e+00 : f32
    %6 = vector.broadcast %cst_5 : f32 to vector<128x64xf32>
    %7 = arith.maximumf %5, %6 : vector<128x64xf32>
    %8 = arith.truncf %7 : vector<128x64xf32> to vector<128x64xbf16>
    %c0_6 = arith.constant 0 : index
    %c0_7 = arith.constant 0 : index
    %9 = vector.load %arg3[%c0_6, %c0_7] : memref<64x128xbf16, #tpu.memory_space<vmem>>, vector<64x128xbf16>
    %cst_8 = arith.constant dense<0.000000e+00> : vector<128x128xf32>
    %10 = tpu.matmul %8, %9, %cst_8 {dimension_numbers = #tpu.dot_dimension_numbers<[1], [0], [0], [1], [0, 0, 1, 1], [], []>} : vector<128x64xbf16>, vector<64x128xbf16>, vector<128x128xf32> -> vector<128x128xf32>
    %c0_9 = arith.constant 0 : index
    %c0_10 = arith.constant 0 : index
    %11 = vector.load %arg4[%c0_9, %c0_10] : memref<1x128xf32, #tpu.memory_space<vmem>>, vector<1x128xf32>
    %12 = vector.broadcast %11 : vector<1x128xf32> to vector<128x128xf32>
    %13 = arith.addf %10, %12 : vector<128x128xf32>
    tpu.wait_dma2 semaphore(%arg8 : memref<!tpu.dma_semaphore, #tpu.memory_space<semaphore_mem>>) src(%arg5 : memref<128x128xbf16, #tpu.memory_space<any>>) dst(%arg7 : memref<128x128xbf16, #tpu.memory_space<vmem>>)
    %c0_11 = arith.constant 0 : index
    %c0_12 = arith.constant 0 : index
    %14 = vector.load %arg7[%c0_11, %c0_12] : memref<128x128xbf16, #tpu.memory_space<vmem>>, vector<128x128xbf16>
    %cst_13 = arith.constant 1.000000e+00 : bf16
    %15 = vector.broadcast %cst_13 : bf16 to vector<128x128xbf16>
    %cst_14 = arith.constant dense<0.000000e+00> : vector<128x128xf32>
    %16 = tpu.matmul %14, %15, %cst_14 {dimension_numbers = #tpu.dot_dimension_numbers<[1], [0], [0], [1], [0, 0, 1, 1], [], []>} : vector<128x128xbf16>, vector<128x128xbf16>, vector<128x128xf32> -> vector<128x128xf32>
    %17 = vector.extract_strided_slice %16 {offsets = [0, 0], sizes = [128, 1], strides = [1, 1]} : vector<128x128xf32> to vector<128x1xf32>
    %cst_15 = arith.constant 1.000000e+00 : f32
    %18 = vector.broadcast %cst_15 : f32 to vector<128x1xf32>
    %19 = arith.maximumf %17, %18 : vector<128x1xf32>
    %20 = math.rsqrt %19 : vector<128x1xf32>
    %cst_16 = arith.constant 0.899999976 : f32
    %21 = vector.broadcast %cst_16 : f32 to vector<128x1xf32>
    %22 = arith.mulf %21, %20 : vector<128x1xf32>
    %23 = arith.mulf %22, %20 : vector<128x1xf32>
    %24 = vector.broadcast %20 : vector<128x1xf32> to vector<128x128xf32>
    %25 = arith.mulf %24, %13 : vector<128x128xf32>
    %cst_17 = arith.constant 1.000000e-01 : f32
    %26 = vector.broadcast %cst_17 : f32 to vector<128x128xf32>
    %27 = arith.mulf %26, %25 : vector<128x128xf32>
    %28 = vector.broadcast %20 : vector<128x1xf32> to vector<128x128xf32>
    %29 = arith.mulf %28, %13 : vector<128x128xf32>
    %c0_i32 = arith.constant 0 : i32
    %30 = arith.truncf %29 : vector<128x128xf32> to vector<128x128xbf16>
    %cst_18 = arith.constant dense<0.000000e+00> : vector<128x128xf32>
    %31 = tpu.matmul %14, %30, %cst_18 {dimension_numbers = #tpu.dot_dimension_numbers<[1], [0], [0], [1], [0, 0, 1, 1], [], []>} : vector<128x128xbf16>, vector<128x128xbf16>, vector<128x128xf32> -> vector<128x128xf32>
    %32 = vector.broadcast %23 : vector<128x1xf32> to vector<128x128xf32>
    %33 = arith.mulf %32, %31 : vector<128x128xf32>
    %34 = arith.addf %33, %27 : vector<128x128xf32>
    %c1_i32 = arith.constant 1 : i32
    %35 = arith.truncf %34 : vector<128x128xf32> to vector<128x128xbf16>
    %cst_19 = arith.constant dense<0.000000e+00> : vector<128x128xf32>
    %36 = tpu.matmul %14, %35, %cst_19 {dimension_numbers = #tpu.dot_dimension_numbers<[1], [0], [0], [1], [0, 0, 1, 1], [], []>} : vector<128x128xbf16>, vector<128x128xbf16>, vector<128x128xf32> -> vector<128x128xf32>
    %37 = vector.broadcast %23 : vector<128x1xf32> to vector<128x128xf32>
    %38 = arith.mulf %37, %36 : vector<128x128xf32>
    %39 = arith.addf %38, %27 : vector<128x128xf32>
    %c2_i32 = arith.constant 2 : i32
    %40 = arith.truncf %39 : vector<128x128xf32> to vector<128x128xbf16>
    %cst_20 = arith.constant dense<0.000000e+00> : vector<128x128xf32>
    %41 = tpu.matmul %14, %40, %cst_20 {dimension_numbers = #tpu.dot_dimension_numbers<[1], [0], [0], [1], [0, 0, 1, 1], [], []>} : vector<128x128xbf16>, vector<128x128xbf16>, vector<128x128xf32> -> vector<128x128xf32>
    %42 = vector.broadcast %23 : vector<128x1xf32> to vector<128x128xf32>
    %43 = arith.mulf %42, %41 : vector<128x128xf32>
    %44 = arith.addf %43, %27 : vector<128x128xf32>
    %c3_i32 = arith.constant 3 : i32
    %45 = arith.truncf %44 : vector<128x128xf32> to vector<128x128xbf16>
    %cst_21 = arith.constant dense<0.000000e+00> : vector<128x128xf32>
    %46 = tpu.matmul %14, %45, %cst_21 {dimension_numbers = #tpu.dot_dimension_numbers<[1], [0], [0], [1], [0, 0, 1, 1], [], []>} : vector<128x128xbf16>, vector<128x128xbf16>, vector<128x128xf32> -> vector<128x128xf32>
    %47 = vector.broadcast %23 : vector<128x1xf32> to vector<128x128xf32>
    %48 = arith.mulf %47, %46 : vector<128x128xf32>
    %49 = arith.addf %48, %27 : vector<128x128xf32>
    %c4_i32 = arith.constant 4 : i32
    %50 = arith.truncf %49 : vector<128x128xf32> to vector<128x128xbf16>
    %cst_22 = arith.constant dense<0.000000e+00> : vector<128x128xf32>
    %51 = tpu.matmul %14, %50, %cst_22 {dimension_numbers = #tpu.dot_dimension_numbers<[1], [0], [0], [1], [0, 0, 1, 1], [], []>} : vector<128x128xbf16>, vector<128x128xbf16>, vector<128x128xf32> -> vector<128x128xf32>
    %52 = vector.broadcast %23 : vector<128x1xf32> to vector<128x128xf32>
    %53 = arith.mulf %52, %51 : vector<128x128xf32>
    %54 = arith.addf %53, %27 : vector<128x128xf32>
    %55 = math.sqrt %19 : vector<128x1xf32>
    %56 = vector.broadcast %55 : vector<128x1xf32> to vector<128x128xf32>
    %57 = arith.mulf %56, %54 : vector<128x128xf32>
    %c0_23 = arith.constant 0 : index
    %c0_24 = arith.constant 0 : index
    %58 = vector.load %arg6[%c0_23, %c0_24] : memref<128x128xf32, #tpu.memory_space<vmem>>, vector<128x128xf32>
    tpu.vector_store %arg6[%c0_23, %c0_24], %57 {strides = array<i32>} : memref<128x128xf32, #tpu.memory_space<vmem>>, vector<128x128xf32>,
    return
  }
}

</mosaic_0001>

<llo_original>
// kernel: tpu_custom_call.1
$region0: #{tpu_custom_call.1}
  #allocation0 [shape = 'u32[]', space=smem, size = 0x4, offset = 0x4, fixed_abs, tag = 'smem constant byte address 0x4 - core index']
  #allocation1 [shape = 'u32[144,128]{1,0:T(1,128)}', space=vmem, size = 0x12000, scoped, tag = 'internal scratch']
  #allocation2 [shape = 'bf16[128,128]{1,0:T(16,128)(2,1)}', space=vmem, size = 0x8000, scoped, tag = 'scratch operand']
  #allocation3 [shape = 's32[1]{0}', space=sflag, size = 0x4, scoped, tag = 'scratch operand']
  #allocation8 [shape = 's32[]', space=sflag, size = 0x4, offset = 0, fixed_abs, tag = 'sflag constant byte address 0x0 - dummy sync flag']
  %s0 = inlined_call_operand.vmem [shape: bf16[128,64], index: 0, kind: input, shape index: {}]
  %s1 = inlined_call_operand.vmem [shape: bf16[64,64], index: 1, kind: input, shape index: {}]
  %s2 = inlined_call_operand.vmem [shape: f32[1,64], index: 2, kind: input, shape index: {}]
  %s3 = inlined_call_operand.hbm [shape: bf16[64,128], index: 3, kind: input, shape index: {}]
  %s4 = inlined_call_operand.vmem [shape: f32[1,128], index: 4, kind: input, shape index: {}]
  %s5 = inlined_call_operand.vmem [shape: bf16[128,128], index: 5, kind: input, shape index: {}]
  %s6 = inlined_call_operand.hbm [shape: f32[128,128], index: 6, kind: output, shape index: {}]
  %s7 = sld [smem:[#allocation0]]
  $region68: #{tpu_custom_call.1} parent=0
    _
  %s9 = ssub.s32 1, %s7
  %s10 = scalar_select 0, %s9, %s7
  $region1: #{tpu_custom_call.1} parent=0
    #allocation4 [shape = 'u8[16384]{0}', space=vmem, size = 0x4000, scoped, tag = 'input window, operand 3, single buffered']
    #allocation5 [shape = 's32[1]{0}', space=sflag, size = 0x4, scoped, tag = 'scoped memory for tpu_custom_call.1']
    #allocation6 [shape = 's32[1]{0}', space=sflag, size = 0x4, scoped, tag = 'scoped memory for tpu_custom_call.1']
    #allocation7 [shape = 'u8[65536]{0}', space=vmem, size = 0x10000, scoped, tag = 'output window, operand 0, single buffered']
    %11 = vsyncpa [#allocation5], 0
    %12 = vsyncpa [#allocation6], 0
    // Predicated region
    $region2: #{tpu_custom_call.1} parent=1 // pred_check
      _
    $region3: #{tpu_custom_call.1} parent=1 // pred_check_branch
      %14 = sbr.rel (0) target = $region5
    $region4: #{tpu_custom_call.1} parent=1 // pred_region
      _
    $region5: #{tpu_custom_call.1} parent=1 // pred_fallthru
      _
    // Predicated region
    $region6: #{tpu_custom_call.1} parent=1 // pred_check
      _
    $region7: #{tpu_custom_call.1} parent=1 // pred_check_branch
      %16 = sbr.rel (0) target = $region9
    $region8: #{tpu_custom_call.1} parent=1 // pred_region
      _
    $region9: #{tpu_custom_call.1} parent=1 // pred_fallthru
      _
    // Predicated region
    $region10: #{tpu_custom_call.1} parent=1 // pred_check
      _
    $region11: #{tpu_custom_call.1} parent=1 // pred_check_branch
      %18 = sbr.rel (0) target = $region13
    $region12: #{tpu_custom_call.1} parent=1 // pred_region
      _
    $region13: #{tpu_custom_call.1} parent=1 // pred_fallthru
      _
    // Predicated region
    $region14: #{tpu_custom_call.1} parent=1 // pred_check
      _
    $region15: #{tpu_custom_call.1} parent=1 // pred_check_branch
      %20 = sbr.rel (0) target = $region17
    $region16: #{tpu_custom_call.1} parent=1 // pred_region
      %s22 = ssub.s32 512, 512
      %23 = vsyncadd [#allocation5], %s22
      %s24 = sshll.u32 [#allocation4], 4
      %s25 = int_to_ptr.vmem [resolvable:$true] %s24
      %30 = dma.hbm_to_vmem [thread:$0]  %s3, 512, %s25, [#allocation5], 64, 64, 4
    $region17: #{tpu_custom_call.1} parent=1 // pred_fallthru
      _
    // Predicated region
    $region18: #{tpu_custom_call.1} parent=1 // pred_check
      _
    $region19: #{tpu_custom_call.1} parent=1 // pred_check_branch
      %32 = sbr.rel (0) target = $region21
    $region20: #{tpu_custom_call.1} parent=1 // pred_region
      _
    $region21: #{tpu_custom_call.1} parent=1 // pred_fallthru
      _
    // Predicated region
    $region22: #{tpu_custom_call.1} parent=1 // pred_check
      _
    $region23: #{tpu_custom_call.1} parent=1 // pred_check_branch
      %34 = sbr.rel (0) target = $region25
    $region24: #{tpu_custom_call.1} parent=1 // pred_region
      %35 = dma.done [#allocation5], 512
    $region25: #{tpu_custom_call.1} parent=1 // pred_fallthru
      _
    %p39 = scmp.lt.u32.totalorder 64, 8
    %p40 = pneg %p39
    // Predicated region
    $region26: #{tpu_custom_call.1} parent=1 // pred_check
      _
    $region27: #{tpu_custom_call.1} parent=1 // pred_check_branch
      %42 = sbr.rel (%p39) target = $region29
    $region28: #{tpu_custom_call.1} parent=1 // pred_region
      %s57 = sand.u32 64, 7
      %p58 = scmp.eq.s32.totalorder %s57, 0
      // Predicated region
      $region41: #{tpu_custom_call.1} parent=28 // pred_check
        %p59 = pneg %p58
      $region42: #{tpu_custom_call.1} parent=28 // pred_check_branch
        %61 = sbr.rel (%p59) target = $region44
      $region43: #{tpu_custom_call.1} parent=28 // pred_region
        loop: start=0, step=1, limit=1
        $region45: #{tpu_custom_call.1} parent=43 // loop_pre_header
          _
        $region46: #{tpu_custom_call.1} parent=43 // loop_header
          %s63 = sphi 0, %s67
          %p64 = scmp.ge.s32.totalorder %s63, 1
          %s68 = sphi %s5, %s5
          %s69 = sphi [#allocation2], [#allocation2]
        $region47: #{tpu_custom_call.1} parent=43 // loop_header_branch
          %66 = sbr.rel (%p64) target = $region51
        $region48: #{tpu_custom_call.1} parent=43 // loop_body
          %v70 = vld [vmem:[%s68] sm:$0xff]
          %71 = vst [vmem:[%s69] sm:$0xff] %v70
          %v72 = vld [vmem:[%s68 + $0x8] sm:$0xff]
          %73 = vst [vmem:[%s69 + $0x8] sm:$0xff] %v72
          %v74 = vld [vmem:[%s68 + $0x10] sm:$0xff]
          %75 = vst [vmem:[%s69 + $0x10] sm:$0xff] %v74
          %v76 = vld [vmem:[%s68 + $0x18] sm:$0xff]
          %77 = vst [vmem:[%s69 + $0x18] sm:$0xff] %v76
          %v78 = vld [vmem:[%s68 + $0x20] sm:$0xff]
          %79 = vst [vmem:[%s69 + $0x20] sm:$0xff] %v78
          %v80 = vld [vmem:[%s68 + $0x28] sm:$0xff]
          %81 = vst [vmem:[%s69 + $0x28] sm:$0xff] %v80
          %v82 = vld [vmem:[%s68 + $0x30] sm:$0xff]
          %83 = vst [vmem:[%s69 + $0x30] sm:$0xff] %v82
          %v84 = vld [vmem:[%s68 + $0x38] sm:$0xff]
          %85 = vst [vmem:[%s69 + $0x38] sm:$0xff] %v84
        $region49: #{tpu_custom_call.1} parent=43 // loop_footer
          %s67 = sadd.s32 1, %s63
        $region50: #{tpu_custom_call.1} parent=43 // loop_footer_branch
          %62 = sbr.rel target = $region46
        $region51: #{tpu_custom_call.1} parent=43 // loop_exit
          _
      $region44: #{tpu_custom_call.1} parent=28 // pred_fallthru
        _
      %p86 = pneg %p58
      // Predicated region
      $region52: #{tpu_custom_call.1} parent=28 // pred_check
        _
      $region53: #{tpu_custom_call.1} parent=28 // pred_check_branch
        %88 = sbr.rel (%p58) target = $region55
      $region54: #{tpu_custom_call.1} parent=28 // pred_region
        %s89 = sand.u32 64, 7
      $region55: #{tpu_custom_call.1} parent=28 // pred_fallthru
        _
    $region29: #{tpu_custom_call.1} parent=1 // pred_fallthru
      _
    // Predicated region
    $region30: #{tpu_custom_call.1} parent=1 // pred_check
      %p43 = pneg %p39
    $region31: #{tpu_custom_call.1} parent=1 // pred_check_branch
      %45 = sbr.rel (%p43) target = $region33
    $region32: #{tpu_custom_call.1} parent=1 // pred_region
      %s46 = sshllo.u32 0, 64
      loop: start=0, step=1, limit=1
      $region34: #{tpu_custom_call.1} parent=32 // loop_pre_header
        _
      $region35: #{tpu_custom_call.1} parent=32 // loop_header
        %s48 = sphi 0, %s52
        %p49 = scmp.ge.s32.totalorder %s48, 1
        %s53 = sphi %s5, %s5
        %s54 = sphi [#allocation2], [#allocation2]
      $region36: #{tpu_custom_call.1} parent=32 // loop_header_branch
        %51 = sbr.rel (%p49) target = $region40
      $region37: #{tpu_custom_call.1} parent=32 // loop_body
        %v55 = vld [vmem:[%s53] sm:%s46]
        %56 = vst [vmem:[%s54] sm:%s46] %v55
      $region38: #{tpu_custom_call.1} parent=32 // loop_footer
        %s52 = sadd.s32 1, %s48
      $region39: #{tpu_custom_call.1} parent=32 // loop_footer_branch
        %47 = sbr.rel target = $region35
      $region40: #{tpu_custom_call.1} parent=32 // loop_exit
        _
    $region33: #{tpu_custom_call.1} parent=1 // pred_fallthru
      _
    // Predicated region
    $region56: #{tpu_custom_call.1} parent=1 // pred_check
      _
    $region57: #{tpu_custom_call.1} parent=1 // pred_check_branch
      %92 = sbr.rel (0) target = $region59
    $region58: #{tpu_custom_call.1} parent=1 // pred_region
      %93 = vsyncadd [#allocation3], 1024
    $region59: #{tpu_custom_call.1} parent=1 // pred_fallthru
      _
    %v94 = vld [vmem:[%s0] sm:$0xf]
    %v95 = vld [vmem:[%s0 + $0x4] sm:$0xf]
    %v96 = vld [vmem:[%s0 + $0x8] sm:$0xf]
    %v97 = vld [vmem:[%s0 + $0xc] sm:$0xf]
    %v98 = vld [vmem:[%s0 + $0x10] sm:$0xf]
    %v99 = vld [vmem:[%s0 + $0x14] sm:$0xf]
    %v100 = vld [vmem:[%s0 + $0x18] sm:$0xf]
    %v101 = vld [vmem:[%s0 + $0x1c] sm:$0xf]
    %v102 = vld [vmem:[%s0 + $0x20] sm:$0xf]
    %v103 = vld [vmem:[%s0 + $0x24] sm:$0xf]
    %v104 = vld [vmem:[%s0 + $0x28] sm:$0xf]
    %v105 = vld [vmem:[%s0 + $0x2c] sm:$0xf]
    %v106 = vld [vmem:[%s0 + $0x30] sm:$0xf]
    %v107 = vld [vmem:[%s0 + $0x34] sm:$0xf]
    %v108 = vld [vmem:[%s0 + $0x38] sm:$0xf]
    %v109 = vld [vmem:[%s0 + $0x3c] sm:$0xf]
    %v110 = vld [vmem:[%s1] sm:$0xf]
    %v111 = vld [vmem:[%s1 + $0x4] sm:$0xf]
    %v112 = vld [vmem:[%s1 + $0x8] sm:$0xf]
    %v113 = vld [vmem:[%s1 + $0xc] sm:$0xf]
    %v114 = vld [vmem:[%s1 + $0x10] sm:$0xf]
    %v115 = vld [vmem:[%s1 + $0x14] sm:$0xf]
    %v116 = vld [vmem:[%s1 + $0x18] sm:$0xf]
    %v117 = vld [vmem:[%s1 + $0x1c] sm:$0xf]
    %v118 = vld [vmem:[%s2] sm:$0x1]
    %v120 = vlaneseq
    %v121 = vshrl.u32 %v120, 7
    %v122 = vsub.s32 0, %v121
    %v123 = vrot.slane %v118, %v122
    %v141 = vunpack.c.l.b16 %v94
    %v142 = vunpack.c.l.b16 %v95
    %v143 = vunpack.c.l.b16 %v96
    %v144 = vunpack.c.l.b16 %v97
    %v145 = vunpack.c.l.b16 %v98
    %v146 = vunpack.c.l.b16 %v99
    %v147 = vunpack.c.l.b16 %v100
    %v148 = vunpack.c.l.b16 %v101
    %v149 = vunpack.c.l.b16 %v102
    %v150 = vunpack.c.l.b16 %v103
    %v151 = vunpack.c.l.b16 %v104
    %v152 = vunpack.c.l.b16 %v105
    %v153 = vunpack.c.l.b16 %v106
    %v154 = vunpack.c.l.b16 %v107
    %v155 = vunpack.c.l.b16 %v108
    %v156 = vunpack.c.l.b16 %v109
    %v157 = vpack.c.b16 %v142, %v141
    %v158 = vpack.c.b16 %v144, %v143
    %v159 = vpack.c.b16 %v146, %v145
    %v160 = vpack.c.b16 %v148, %v147
    %v161 = vpack.c.b16 %v150, %v149
    %v162 = vpack.c.b16 %v152, %v151
    %v163 = vpack.c.b16 %v154, %v153
    %v164 = vpack.c.b16 %v156, %v155
    %v173 = vunpack.c.l.b16 %v110
    %v174 = vunpack.c.l.b16 %v111
    %v175 = vunpack.c.l.b16 %v112
    %v176 = vunpack.c.l.b16 %v113
    %v177 = vunpack.c.l.b16 %v114
    %v178 = vunpack.c.l.b16 %v115
    %v179 = vunpack.c.l.b16 %v116
    %v180 = vunpack.c.l.b16 %v117
    %v181 = vpack.c.b16 %v174, %v173
    %v182 = vpack.c.b16 %v176, %v175
    %v183 = vpack.c.b16 %v178, %v177
    %v184 = vpack.c.b16 %v180, %v179
    %vm189 = vcmask 523264
    %v191 = vsel %vm189, %v157, 0
    %v194 = vsel %vm189, %v158, 0
    %v197 = vsel %vm189, %v159, 0
    %v200 = vsel %vm189, %v160, 0
    %v203 = vsel %vm189, %v161, 0
    %v206 = vsel %vm189, %v162, 0
    %v209 = vsel %vm189, %v163, 0
    %v212 = vsel %vm189, %v164, 0
    %214 = vmatprep.subr.bf16.mxu0 0
    %215 = vmatpush1.bf16.msra.mxu0 %v181
    %216 = vmatprep.subr.bf16.mxu0 0
    %217 = vmatpush1.bf16.msra.mxu0 %v182
    %218 = vmatprep.subr.bf16.mxu0 0
    %219 = vmatpush1.bf16.msra.mxu0 %v183
    %220 = vmatprep.subr.bf16.mxu0 0
    %221 = vmatpush1.bf16.msra.mxu0 %v184
    %222 = vmatprep.subr.bf16.mxu0 0
    %223 = vmatpush1.bf16.msra.mxu0 0
    %224 = vmatprep.subr.bf16.mxu0 0
    %225 = vmatpush1.bf16.msra.mxu0 0
    %226 = vmatprep.subr.bf16.mxu0 0
    %227 = vmatpush1.bf16.msra.mxu0 0
    %228 = vmatprep.subr.bf16.mxu0 0
    %229 = vmatpush1.bf16.msra.mxu0 0
    %230 = vmatprep.subr.bf16.mxu0 0
    %231 = vmatpush1.bf16.msra.mxu0 0
    %232 = vmatprep.subr.bf16.mxu0 0
    %233 = vmatpush1.bf16.msra.mxu0 0
    %234 = vmatprep.subr.bf16.mxu0 0
    %235 = vmatpush1.bf16.msra.mxu0 0
    %236 = vmatprep.subr.bf16.mxu0 0
    %237 = vmatpush1.bf16.msra.mxu0 0
    %238 = vmatprep.subr.bf16.mxu0 0
    %239 = vmatpush1.bf16.msra.mxu0 0
    %240 = vmatprep.subr.bf16.mxu0 0
    %241 = vmatpush1.bf16.msra.mxu0 0
    %242 = vmatprep.subr.bf16.mxu0 0
    %243 = vmatpush1.bf16.msra.mxu0 0
    %244 = vmatprep.subr.bf16.mxu0 0
    %245 = vmatpush1.bf16.msra.mxu0 0
    %246 = vmatprep.mubr.bf16.mxu0 0
    %247 = vmatmul.mubr.bf16.gmra.mrb[0].mxu0 %v191
    %v248 = vpop.f32.mrb[0].mxu0
    %v249 = vadd.f32 %v123, %v248
    %v250 = vpop.f32.mrb[0].mxu0
    %v251 = vpop.f32.mrb[0].mxu0
    %v252 = vadd.f32 %v123, %v251
    %v253 = vpop.f32.mrb[0].mxu0
    %254 = vmatprep.mubr.bf16.mxu0 0
    %255 = vmatmul.mubr.bf16.gmra.mrb[0].mxu0 %v194
    %v256 = vpop.f32.mrb[0].mxu0
    %v257 = vadd.f32 %v123, %v256
    %v258 = vpop.f32.mrb[0].mxu0
    %v259 = vpop.f32.mrb[0].mxu0
    %v260 = vadd.f32 %v123, %v259
    %v261 = vpop.f32.mrb[0].mxu0
    %262 = vmatprep.mubr.bf16.mxu0 0
    %263 = vmatmul.mubr.bf16.gmra.mrb[0].mxu0 %v197
    %v264 = vpop.f32.mrb[0].mxu0
    %v265 = vadd.f32 %v123, %v264
    %v266 = vpop.f32.mrb[0].mxu0
    %v267 = vpop.f32.mrb[0].mxu0
    %v268 = vadd.f32 %v123, %v267
    %v269 = vpop.f32.mrb[0].mxu0
    %270 = vmatprep.mubr.bf16.mxu0 0
    %271 = vmatmul.mubr.bf16.gmra.mrb[0].mxu0 %v200
    %v272 = vpop.f32.mrb[0].mxu0
    %v273 = vadd.f32 %v123, %v272
    %v274 = vpop.f32.mrb[0].mxu0
    %v275 = vpop.f32.mrb[0].mxu0
    %v276 = vadd.f32 %v123, %v275
    %v277 = vpop.f32.mrb[0].mxu0
    %278 = vmatprep.mubr.bf16.mxu0 0
    %279 = vmatmul.mubr.bf16.gmra.mrb[0].mxu0 %v203
    %v280 = vpop.f32.mrb[0].mxu0
    %v281 = vadd.f32 %v123, %v280
    %v282 = vpop.f32.mrb[0].mxu0
    %v283 = vpop.f32.mrb[0].mxu0
    %v284 = vadd.f32 %v123, %v283
    %v285 = vpop.f32.mrb[0].mxu0
    %286 = vmatprep.mubr.bf16.mxu0 0
    %287 = vmatmul.mubr.bf16.gmra.mrb[0].mxu0 %v206
    %v288 = vpop.f32.mrb[0].mxu0
    %v289 = vadd.f32 %v123, %v288
    %v290 = vpop.f32.mrb[0].mxu0
    %v291 = vpop.f32.mrb[0].mxu0
    %v292 = vadd.f32 %v123, %v291
    %v293 = vpop.f32.mrb[0].mxu0
    %294 = vmatprep.mubr.bf16.mxu0 0
    %295 = vmatmul.mubr.bf16.gmra.mrb[0].mxu0 %v209
    %v296 = vpop.f32.mrb[0].mxu0
    %v297 = vadd.f32 %v123, %v296
    %v298 = vpop.f32.mrb[0].mxu0
    %v299 = vpop.f32.mrb[0].mxu0
    %v300 = vadd.f32 %v123, %v299
    %v301 = vpop.f32.mrb[0].mxu0
    %302 = vmatprep.mubr.bf16.mxu0 0
    %303 = vmatmul.mubr.bf16.gmra.mrb[0].mxu0 %v212
    %v304 = vpop.f32.mrb[0].mxu0
    %v305 = vadd.f32 %v123, %v304
    %v306 = vpop.f32.mrb[0].mxu0
    %v307 = vpop.f32.mrb[0].mxu0
    %v308 = vadd.f32 %v123, %v307
    %v309 = vpop.f32.mrb[0].mxu0
    %310 = vdwg.mxu0
    %v311 = vmax.f32 %v249, 0.0
    %v312 = vmax.f32 %v252, 0.0
    %v313 = vmax.f32 %v257, 0.0
    %v314 = vmax.f32 %v260, 0.0
    %v315 = vmax.f32 %v265, 0.0
    %v316 = vmax.f32 %v268, 0.0
    %v317 = vmax.f32 %v273, 0.0
    %v318 = vmax.f32 %v276, 0.0
    %v319 = vmax.f32 %v281, 0.0
    %v320 = vmax.f32 %v284, 0.0
    %v321 = vmax.f32 %v289, 0.0
    %v322 = vmax.f32 %v292, 0.0
    %v323 = vmax.f32 %v297, 0.0
    %v324 = vmax.f32 %v300, 0.0
    %v325 = vmax.f32 %v305, 0.0
    %v326 = vmax.f32 %v308, 0.0
    %v327 = vpack.c.bf16 %v312, %v311
    %v328 = vpack.c.bf16 %v314, %v313
    %v329 = vpack.c.bf16 %v316, %v315
    %v330 = vpack.c.bf16 %v318, %v317
    %v331 = vpack.c.bf16 %v320, %v319
    %v332 = vpack.c.bf16 %v322, %v321
    %v333 = vpack.c.bf16 %v324, %v323
    %v334 = vpack.c.bf16 %v326, %v325
    %v335 = vld [vmem:[#allocation4] sm:$0xf]
    %v336 = vld [vmem:[#allocation4 + $0x4] sm:$0xf]
    %v337 = vld [vmem:[#allocation4 + $0x8] sm:$0xf]
    %v338 = vld [vmem:[#allocation4 + $0xc] sm:$0xf]
    %v339 = vld [vmem:[#allocation4 + $0x10] sm:$0xf]
    %v340 = vld [vmem:[#allocation4 + $0x14] sm:$0xf]
    %v341 = vld [vmem:[#allocation4 + $0x18] sm:$0xf]
    %v342 = vld [vmem:[#allocation4 + $0x1c] sm:$0xf]
    %v343 = vld [vmem:[%s4] sm:$0x1]
    %v345 = vlaneseq
    %v346 = vshrl.u32 %v345, 7
    %v347 = vsub.s32 0, %v346
    %v348 = vrot.slane %v343, %v347
    %v358 = vunpack.c.l.b16 %v335
    %v359 = vunpack.c.l.b16 %v336
    %v360 = vunpack.c.l.b16 %v337
    %v361 = vunpack.c.l.b16 %v338
    %v362 = vunpack.c.l.b16 %v339
    %v363 = vunpack.c.l.b16 %v340
    %v364 = vunpack.c.l.b16 %v341
    %v365 = vunpack.c.l.b16 %v342
    %v366 = vpack.c.b16 %v359, %v358
    %v367 = vpack.c.b16 %v361, %v360
    %v368 = vpack.c.b16 %v363, %v362
    %v369 = vpack.c.b16 %v365, %v364
    %v375 = vsel %vm189, %v327, 0
    %v378 = vsel %vm189, %v328, 0
    %v381 = vsel %vm189, %v329, 0
    %v384 = vsel %vm189, %v330, 0
    %v387 = vsel %vm189, %v331, 0
    %v390 = vsel %vm189, %v332, 0
    %v393 = vsel %vm189, %v333, 0
    %v396 = vsel %vm189, %v334, 0
    %398 = vmatprep.subr.bf16.mxu0 0
    %399 = vmatpush1.bf16.msra.mxu0 %v366
    %400 = vmatprep.subr.bf16.mxu0 0
    %401 = vmatpush1.bf16.msra.mxu0 %v367
    %402 = vmatprep.subr.bf16.mxu0 0
    %403 = vmatpush1.bf16.msra.mxu0 %v368
    %404 = vmatprep.subr.bf16.mxu0 0
    %405 = vmatpush1.bf16.msra.mxu0 %v369
    %406 = vmatprep.subr.bf16.mxu0 0
    %407 = vmatpush1.bf16.msra.mxu0 0
    %408 = vmatprep.subr.bf16.mxu0 0
    %409 = vmatpush1.bf16.msra.mxu0 0
    %410 = vmatprep.subr.bf16.mxu0 0
    %411 = vmatpush1.bf16.msra.mxu0 0
    %412 = vmatprep.subr.bf16.mxu0 0
    %413 = vmatpush1.bf16.msra.mxu0 0
    %414 = vmatprep.subr.bf16.mxu0 0
    %415 = vmatpush1.bf16.msra.mxu0 0
    %416 = vmatprep.subr.bf16.mxu0 0
    %417 = vmatpush1.bf16.msra.mxu0 0
    %418 = vmatprep.subr.bf16.mxu0 0
    %419 = vmatpush1.bf16.msra.mxu0 0
    %420 = vmatprep.subr.bf16.mxu0 0
    %421 = vmatpush1.bf16.msra.mxu0 0
    %422 = vmatprep.subr.bf16.mxu0 0
    %423 = vmatpush1.bf16.msra.mxu0 0
    %424 = vmatprep.subr.bf16.mxu0 0
    %425 = vmatpush1.bf16.msra.mxu0 0
    %426 = vmatprep.subr.bf16.mxu0 0
    %427 = vmatpush1.bf16.msra.mxu0 0
    %428 = vmatprep.subr.bf16.mxu0 0
    %429 = vmatpush1.bf16.msra.mxu0 0
    %430 = vmatprep.mubr.bf16.mxu0 0
    %431 = vmatmul.mubr.bf16.gmra.mrb[0].mxu0 %v375
    %v432 = vpop.f32.mrb[0].mxu0
    %v433 = vadd.f32 %v348, %v432
    %v434 = vpop.f32.mrb[0].mxu0
    %v435 = vpop.f32.mrb[0].mxu0
    %v436 = vadd.f32 %v348, %v435
    %v437 = vpop.f32.mrb[0].mxu0
    %438 = vmatprep.mubr.bf16.mxu0 0
    %439 = vmatmul.mubr.bf16.gmra.mrb[0].mxu0 %v378
    %v440 = vpop.f32.mrb[0].mxu0
    %v441 = vadd.f32 %v348, %v440
    %v442 = vpop.f32.mrb[0].mxu0
    %v443 = vpop.f32.mrb[0].mxu0
    %v444 = vadd.f32 %v348, %v443
    %v445 = vpop.f32.mrb[0].mxu0
    %446 = vmatprep.mubr.bf16.mxu0 0
    %447 = vmatmul.mubr.bf16.gmra.mrb[0].mxu0 %v381
    %v448 = vpop.f32.mrb[0].mxu0
    %v449 = vadd.f32 %v348, %v448
    %v450 = vpop.f32.mrb[0].mxu0
    %v451 = vpop.f32.mrb[0].mxu0
    %v452 = vadd.f32 %v348, %v451
    %v453 = vpop.f32.mrb[0].mxu0
    %454 = vmatprep.mubr.bf16.mxu0 0
    %455 = vmatmul.mubr.bf16.gmra.mrb[0].mxu0 %v384
    %v456 = vpop.f32.mrb[0].mxu0
    %v457 = vadd.f32 %v348, %v456
    %v458 = vpop.f32.mrb[0].mxu0
    %v459 = vpop.f32.mrb[0].mxu0
    %v460 = vadd.f32 %v348, %v459
    %v461 = vpop.f32.mrb[0].mxu0
    %462 = vmatprep.mubr.bf16.mxu0 0
    %463 = vmatmul.mubr.bf16.gmra.mrb[0].mxu0 %v387
    %v464 = vpop.f32.mrb[0].mxu0
    %v465 = vadd.f32 %v348, %v464
    %v466 = vpop.f32.mrb[0].mxu0
    %v467 = vpop.f32.mrb[0].mxu0
    %v468 = vadd.f32 %v348, %v467
    %v469 = vpop.f32.mrb[0].mxu0
    %470 = vmatprep.mubr.bf16.mxu0 0
    %471 = vmatmul.mubr.bf16.gmra.mrb[0].mxu0 %v390
    %v472 = vpop.f32.mrb[0].mxu0
    %v473 = vadd.f32 %v348, %v472
    %v474 = vpop.f32.mrb[0].mxu0
    %v475 = vpop.f32.mrb[0].mxu0
    %v476 = vadd.f32 %v348, %v475
    %v477 = vpop.f32.mrb[0].mxu0
    %478 = vmatprep.mubr.bf16.mxu0 0
    %479 = vmatmul.mubr.bf16.gmra.mrb[0].mxu0 %v393
    %v480 = vpop.f32.mrb[0].mxu0
    %v481 = vadd.f32 %v348, %v480
    %v482 = vpop.f32.mrb[0].mxu0
    %v483 = vpop.f32.mrb[0].mxu0
    %v484 = vadd.f32 %v348, %v483
    %v485 = vpop.f32.mrb[0].mxu0
    %486 = vmatprep.mubr.bf16.mxu0 0
    %487 = vmatmul.mubr.bf16.gmra.mrb[0].mxu0 %v396
    %v488 = vpop.f32.mrb[0].mxu0
    %v489 = vadd.f32 %v348, %v488
    %v490 = vpop.f32.mrb[0].mxu0
    %v491 = vpop.f32.mrb[0].mxu0
    %v492 = vadd.f32 %v348, %v491
    %v493 = vpop.f32.mrb[0].mxu0
    %494 = vdwg.mxu0
    %s495 = smul.u32 4, 16
    %s496 = smul.u32 %s495, 1
    %s497 = sshll.u32 %s496, 4
    %498 = dma.done [#allocation3], %s497
    %v499 = vld [vmem:[#allocation2] sm:$0xff]
    %v500 = vld [vmem:[#allocation2 + $0x8] sm:$0xff]
    %v501 = vld [vmem:[#allocation2 + $0x10] sm:$0xff]
    %v502 = vld [vmem:[#allocation2 + $0x18] sm:$0xff]
    %v503 = vld [vmem:[#allocation2 + $0x20] sm:$0xff]
    %v504 = vld [vmem:[#allocation2 + $0x28] sm:$0xff]
    %v505 = vld [vmem:[#allocation2 + $0x30] sm:$0xff]
    %v506 = vld [vmem:[#allocation2 + $0x38] sm:$0xff]
    %507 = vmatprep.subr.bf16.mxu0 0
    %508 = vmatpush1.bf16.msra.mxu0 1065369472
    %509 = vmatprep.subr.bf16.mxu0 0
    %510 = vmatpush1.bf16.msra.mxu0 1065369472
    %511 = vmatprep.subr.bf16.mxu0 0
    %512 = vmatpush1.bf16.msra.mxu0 1065369472
    %513 = vmatprep.subr.bf16.mxu0 0
    %514 = vmatpush1.bf16.msra.mxu0 1065369472
    %515 = vmatprep.subr.bf16.mxu0 0
    %516 = vmatpush1.bf16.msra.mxu0 1065369472
    %517 = vmatprep.subr.bf16.mxu0 0
    %518 = vmatpush1.bf16.msra.mxu0 1065369472
    %519 = vmatprep.subr.bf16.mxu0 0
    %520 = vmatpush1.bf16.msra.mxu0 1065369472
    %521 = vmatprep.subr.bf16.mxu0 0
    %522 = vmatpush1.bf16.msra.mxu0 1065369472
    %523 = vmatprep.subr.bf16.mxu0 0
    %524 = vmatpush1.bf16.msra.mxu0 0
    %525 = vmatprep.subr.bf16.mxu0 0
    %526 = vmatpush1.bf16.msra.mxu0 0
    %527 = vmatprep.subr.bf16.mxu0 0
    %528 = vmatpush1.bf16.msra.mxu0 0
    %529 = vmatprep.subr.bf16.mxu0 0
    %530 = vmatpush1.bf16.msra.mxu0 0
    %531 = vmatprep.subr.bf16.mxu0 0
    %532 = vmatpush1.bf16.msra.mxu0 0
    %533 = vmatprep.subr.bf16.mxu0 0
    %534 = vmatpush1.bf16.msra.mxu0 0
    %535 = vmatprep.subr.bf16.mxu0 0
    %536 = vmatpush1.bf16.msra.mxu0 0
    %537 = vmatprep.subr.bf16.mxu0 0
    %538 = vmatpush1.bf16.msra.mxu0 0
    %539 = vmatprep.mubr.bf16.mxu0 0
    %540 = vmatmul.mubr.bf16.gmra.mrb[0].mxu0 %v499
    %v541 = vpop.f32.mrb[0].mxu0
    %v542 = vadd.f32 0.0, %v541
    %v543 = vpop.f32.mrb[0].mxu0
    %v544 = vpop.f32.mrb[0].mxu0
    %v545 = vadd.f32 0.0, %v544
    %v546 = vpop.f32.mrb[0].mxu0
    %547 = vmatprep.mubr.bf16.mxu0 0
    %548 = vmatmul.mubr.bf16.gmra.mrb[0].mxu0 %v500
    %v549 = vpop.f32.mrb[0].mxu0
    %v550 = vadd.f32 0.0, %v549
    %v551 = vpop.f32.mrb[0].mxu0
    %v552 = vpop.f32.mrb[0].mxu0
    %v553 = vadd.f32 0.0, %v552
    %v554 = vpop.f32.mrb[0].mxu0
    %555 = vmatprep.mubr.bf16.mxu0 0
    %556 = vmatmul.mubr.bf16.gmra.mrb[0].mxu0 %v501
    %v557 = vpop.f32.mrb[0].mxu0
    %v558 = vadd.f32 0.0, %v557
    %v559 = vpop.f32.mrb[0].mxu0
    %v560 = vpop.f32.mrb[0].mxu0
    %v561 = vadd.f32 0.0, %v560
    %v562 = vpop.f32.mrb[0].mxu0
    %563 = vmatprep.mubr.bf16.mxu0 0
    %564 = vmatmul.mubr.bf16.gmra.mrb[0].mxu0 %v502
    %v565 = vpop.f32.mrb[0].mxu0
    %v566 = vadd.f32 0.0, %v565
    %v567 = vpop.f32.mrb[0].mxu0
    %v568 = vpop.f32.mrb[0].mxu0
    %v569 = vadd.f32 0.0, %v568
    %v570 = vpop.f32.mrb[0].mxu0
    %571 = vmatprep.mubr.bf16.mxu0 0
    %572 = vmatmul.mubr.bf16.gmra.mrb[0].mxu0 %v503
    %v573 = vpop.f32.mrb[0].mxu0
    %v574 = vadd.f32 0.0, %v573
    %v575 = vpop.f32.mrb[0].mxu0
    %v576 = vpop.f32.mrb[0].mxu0
    %v577 = vadd.f32 0.0, %v576
    %v578 = vpop.f32.mrb[0].mxu0
    %579 = vmatprep.mubr.bf16.mxu0 0
    %580 = vmatmul.mubr.bf16.gmra.mrb[0].mxu0 %v504
    %v581 = vpop.f32.mrb[0].mxu0
    %v582 = vadd.f32 0.0, %v581
    %v583 = vpop.f32.mrb[0].mxu0
    %v584 = vpop.f32.mrb[0].mxu0
    %v585 = vadd.f32 0.0, %v584
    %v586 = vpop.f32.mrb[0].mxu0
    %587 = vmatprep.mubr.bf16.mxu0 0
    %588 = vmatmul.mubr.bf16.gmra.mrb[0].mxu0 %v505
    %v589 = vpop.f32.mrb[0].mxu0
    %v590 = vadd.f32 0.0, %v589
    %v591 = vpop.f32.mrb[0].mxu0
    %v592 = vpop.f32.mrb[0].mxu0
    %v593 = vadd.f32 0.0, %v592
    %v594 = vpop.f32.mrb[0].mxu0
    %595 = vmatprep.mubr.bf16.mxu0 0
    %596 = vmatmul.mubr.bf16.gmra.mrb[0].mxu0 %v506
    %v597 = vpop.f32.mrb[0].mxu0
    %v598 = vadd.f32 0.0, %v597
    %v599 = vpop.f32.mrb[0].mxu0
    %v600 = vpop.f32.mrb[0].mxu0
    %v601 = vadd.f32 0.0, %v600
    %v602 = vpop.f32.mrb[0].mxu0
    %603 = vdwg.mxu0
    %v604 = vmax.f32 %v542, 1.0
    %v605 = vmax.f32 %v545, 1.0
    %v606 = vmax.f32 %v550, 1.0
    %v607 = vmax.f32 %v553, 1.0
    %v608 = vmax.f32 %v558, 1.0
    %v609 = vmax.f32 %v561, 1.0
    %v610 = vmax.f32 %v566, 1.0
    %v611 = vmax.f32 %v569, 1.0
    %v612 = vmax.f32 %v574, 1.0
    %v613 = vmax.f32 %v577, 1.0
    %v614 = vmax.f32 %v582, 1.0
    %v615 = vmax.f32 %v585, 1.0
    %v616 = vmax.f32 %v590, 1.0
    %v617 = vmax.f32 %v593, 1.0
    %v618 = vmax.f32 %v598, 1.0
    %v619 = vmax.f32 %v601, 1.0
    %v620 = vrsqrt.pop %v604
    %v621 = vrsqrt.pop %v605
    %v622 = vrsqrt.pop %v606
    %v623 = vrsqrt.pop %v607
    %v624 = vrsqrt.pop %v608
    %v625 = vrsqrt.pop %v609
    %v626 = vrsqrt.pop %v610
    %v627 = vrsqrt.pop %v611
    %v628 = vrsqrt.pop %v612
    %v629 = vrsqrt.pop %v613
    %v630 = vrsqrt.pop %v614
    %v631 = vrsqrt.pop %v615
    %v632 = vrsqrt.pop %v616
    %v633 = vrsqrt.pop %v617
    %v634 = vrsqrt.pop %v618
    %v635 = vrsqrt.pop %v619
    %v636 = vmul.f32 %v620, 0.9
    %v637 = vmul.f32 %v621, 0.9
    %v638 = vmul.f32 %v622, 0.9
    %v639 = vmul.f32 %v623, 0.9
    %v640 = vmul.f32 %v624, 0.9
    %v641 = vmul.f32 %v625, 0.9
    %v642 = vmul.f32 %v626, 0.9
    %v643 = vmul.f32 %v627, 0.9
    %v644 = vmul.f32 %v628, 0.9
    %v645 = vmul.f32 %v629, 0.9
    %v646 = vmul.f32 %v630, 0.9
    %v647 = vmul.f32 %v631, 0.9
    %v648 = vmul.f32 %v632, 0.9
    %v649 = vmul.f32 %v633, 0.9
    %v650 = vmul.f32 %v634, 0.9
    %v651 = vmul.f32 %v635, 0.9
    %v652 = vmul.f32 %v636, %v620
    %v653 = vmul.f32 %v637, %v621
    %v654 = vmul.f32 %v638, %v622
    %v655 = vmul.f32 %v639, %v623
    %v656 = vmul.f32 %v640, %v624
    %v657 = vmul.f32 %v641, %v625
    %v658 = vmul.f32 %v642, %v626
    %v659 = vmul.f32 %v643, %v627
    %v660 = vmul.f32 %v644, %v628
    %v661 = vmul.f32 %v645, %v629
    %v662 = vmul.f32 %v646, %v630
    %v663 = vmul.f32 %v647, %v631
    %v664 = vmul.f32 %v648, %v632
    %v665 = vmul.f32 %v649, %v633
    %v666 = vmul.f32 %v650, %v634
    %v667 = vmul.f32 %v651, %v635
    %669 = vset.pattern.permute.xlu0 0
    %670 = vperm.xlu0 %669, %v620
    %v671 = vpop.permute.xlu0 %670
    %674 = vset.pattern.permute.xlu0 0
    %675 = vperm.xlu0 %674, %v621
    %v676 = vpop.permute.xlu0 %675
    %679 = vset.pattern.permute.xlu0 0
    %680 = vperm.xlu0 %679, %v622
    %v681 = vpop.permute.xlu0 %680
    %684 = vset.pattern.permute.xlu0 0
    %685 = vperm.xlu0 %684, %v623
    %v686 = vpop.permute.xlu0 %685
    %689 = vset.pattern.permute.xlu0 0
    %690 = vperm.xlu0 %689, %v624
    %v691 = vpop.permute.xlu0 %690
    %694 = vset.pattern.permute.xlu0 0
    %695 = vperm.xlu0 %694, %v625
    %v696 = vpop.permute.xlu0 %695
    %699 = vset.pattern.permute.xlu0 0
    %700 = vperm.xlu0 %699, %v626
    %v701 = vpop.permute.xlu0 %700
    %704 = vset.pattern.permute.xlu0 0
    %705 = vperm.xlu0 %704, %v627
    %v706 = vpop.permute.xlu0 %705
    %709 = vset.pattern.permute.xlu0 0
    %710 = vperm.xlu0 %709, %v628
    %v711 = vpop.permute.xlu0 %710
    %714 = vset.pattern.permute.xlu0 0
    %715 = vperm.xlu0 %714, %v629
    %v716 = vpop.permute.xlu0 %715
    %719 = vset.pattern.permute.xlu0 0
    %720 = vperm.xlu0 %719, %v630
    %v721 = vpop.permute.xlu0 %720
    %724 = vset.pattern.permute.xlu0 0
    %725 = vperm.xlu0 %724, %v631
    %v726 = vpop.permute.xlu0 %725
    %729 = vset.pattern.permute.xlu0 0
    %730 = vperm.xlu0 %729, %v632
    %v731 = vpop.permute.xlu0 %730
    %734 = vset.pattern.permute.xlu0 0
    %735 = vperm.xlu0 %734, %v633
    %v736 = vpop.permute.xlu0 %735
    %739 = vset.pattern.permute.xlu0 0
    %740 = vperm.xlu0 %739, %v634
    %v741 = vpop.permute.xlu0 %740
    %744 = vset.pattern.permute.xlu0 0
    %745 = vperm.xlu0 %744, %v635
    %v746 = vpop.permute.xlu0 %745
    %v748 = vmul.f32 %v671, %v433
    %v749 = vmul.f32 %v676, %v436
    %v750 = vmul.f32 %v681, %v441
    %v751 = vmul.f32 %v686, %v444
    %v752 = vmul.f32 %v691, %v449
    %v753 = vmul.f32 %v696, %v452
    %v754 = vmul.f32 %v701, %v457
    %v755 = vmul.f32 %v706, %v460
    %v756 = vmul.f32 %v711, %v465
    %v757 = vmul.f32 %v716, %v468
    %v758 = vmul.f32 %v721, %v473
    %v759 = vmul.f32 %v726, %v476
    %v760 = vmul.f32 %v731, %v481
    %v761 = vmul.f32 %v736, %v484
    %v762 = vmul.f32 %v741, %v489
    %v763 = vmul.f32 %v746, %v492
    %v764 = vmul.f32 %v748, 0.1
    %v765 = vmul.f32 %v749, 0.1
    %v766 = vmul.f32 %v750, 0.1
    %v767 = vmul.f32 %v751, 0.1
    %v768 = vmul.f32 %v752, 0.1
    %v769 = vmul.f32 %v753, 0.1
    %v770 = vmul.f32 %v754, 0.1
    %v771 = vmul.f32 %v755, 0.1
    %v772 = vmul.f32 %v756, 0.1
    %v773 = vmul.f32 %v757, 0.1
    %v774 = vmul.f32 %v758, 0.1
    %v775 = vmul.f32 %v759, 0.1
    %v776 = vmul.f32 %v760, 0.1
    %v777 = vmul.f32 %v761, 0.1
    %v778 = vmul.f32 %v762, 0.1
    %v779 = vmul.f32 %v763, 0.1
    %v780 = vpack.c.bf16 %v749, %v748
    %v781 = vpack.c.bf16 %v751, %v750
    %v782 = vpack.c.bf16 %v753, %v752
    %v783 = vpack.c.bf16 %v755, %v754
    %v784 = vpack.c.bf16 %v757, %v756
    %v785 = vpack.c.bf16 %v759, %v758
    %v786 = vpack.c.bf16 %v761, %v760
    %v787 = vpack.c.bf16 %v763, %v762
    %788 = vmatprep.subr.bf16.mxu0 0
    %789 = vmatpush1.bf16.msra.mxu0 %v780
    %790 = vmatprep.subr.bf16.mxu0 0
    %791 = vmatpush1.bf16.msra.mxu0 %v781
    %792 = vmatprep.subr.bf16.mxu0 0
    %793 = vmatpush1.bf16.msra.mxu0 %v782
    %794 = vmatprep.subr.bf16.mxu0 0
    %795 = vmatpush1.bf16.msra.mxu0 %v783
    %796 = vmatprep.subr.bf16.mxu0 0
    %797 = vmatpush1.bf16.msra.mxu0 %v784
    %798 = vmatprep.subr.bf16.mxu0 0
    %799 = vmatpush1.bf16.msra.mxu0 %v785
    %800 = vmatprep.subr.bf16.mxu0 0
    %801 = vmatpush1.bf16.msra.mxu0 %v786
    %802 = vmatprep.subr.bf16.mxu0 0
    %803 = vmatpush1.bf16.msra.mxu0 %v787
    %804 = vmatprep.subr.bf16.mxu0 0
    %805 = vmatpush1.bf16.msra.mxu0 0
    %806 = vmatprep.subr.bf16.mxu0 0
    %807 = vmatpush1.bf16.msra.mxu0 0
    %808 = vmatprep.subr.bf16.mxu0 0
    %809 = vmatpush1.bf16.msra.mxu0 0
    %810 = vmatprep.subr.bf16.mxu0 0
    %811 = vmatpush1.bf16.msra.mxu0 0
    %812 = vmatprep.subr.bf16.mxu0 0
    %813 = vmatpush1.bf16.msra.mxu0 0
    %814 = vmatprep.subr.bf16.mxu0 0
    %815 = vmatpush1.bf16.msra.mxu0 0
    %816 = vmatprep.subr.bf16.mxu0 0
    %817 = vmatpush1.bf16.msra.mxu0 0
    %818 = vmatprep.subr.bf16.mxu0 0
    %819 = vmatpush1.bf16.msra.mxu0 0
    %820 = vmatprep.mubr.bf16.mxu0 0
    %821 = vmatmul.mubr.bf16.gmra.mrb[0].mxu0 %v499
    %v822 = vpop.f32.mrb[0].mxu0
    %v823 = vadd.f32 0.0, %v822
    %v824 = vpop.f32.mrb[0].mxu0
    %v825 = vpop.f32.mrb[0].mxu0
    %v826 = vadd.f32 0.0, %v825
    %v827 = vpop.f32.mrb[0].mxu0
    %828 = vmatprep.mubr.bf16.mxu0 0
    %829 = vmatmul.mubr.bf16.gmra.mrb[0].mxu0 %v500
    %v830 = vpop.f32.mrb[0].mxu0
    %v831 = vadd.f32 0.0, %v830
    %v832 = vpop.f32.mrb[0].mxu0
    %v833 = vpop.f32.mrb[0].mxu0
    %v834 = vadd.f32 0.0, %v833
    %v835 = vpop.f32.mrb[0].mxu0
    %836 = vmatprep.mubr.bf16.mxu0 0
    %837 = vmatmul.mubr.bf16.gmra.mrb[0].mxu0 %v501
    %v838 = vpop.f32.mrb[0].mxu0
    %v839 = vadd.f32 0.0, %v838
    %v840 = vpop.f32.mrb[0].mxu0
    %v841 = vpop.f32.mrb[0].mxu0
    %v842 = vadd.f32 0.0, %v841
    %v843 = vpop.f32.mrb[0].mxu0
    %844 = vmatprep.mubr.bf16.mxu0 0
    %845 = vmatmul.mubr.bf16.gmra.mrb[0].mxu0 %v502
    %v846 = vpop.f32.mrb[0].mxu0
    %v847 = vadd.f32 0.0, %v846
    %v848 = vpop.f32.mrb[0].mxu0
    %v849 = vpop.f32.mrb[0].mxu0
    %v850 = vadd.f32 0.0, %v849
    %v851 = vpop.f32.mrb[0].mxu0
    %852 = vmatprep.mubr.bf16.mxu0 0
    %853 = vmatmul.mubr.bf16.gmra.mrb[0].mxu0 %v503
    %v854 = vpop.f32.mrb[0].mxu0
    %v855 = vadd.f32 0.0, %v854
    %v856 = vpop.f32.mrb[0].mxu0
    %v857 = vpop.f32.mrb[0].mxu0
    %v858 = vadd.f32 0.0, %v857
    %v859 = vpop.f32.mrb[0].mxu0
    %860 = vmatprep.mubr.bf16.mxu0 0
    %861 = vmatmul.mubr.bf16.gmra.mrb[0].mxu0 %v504
    %v862 = vpop.f32.mrb[0].mxu0
    %v863 = vadd.f32 0.0, %v862
    %v864 = vpop.f32.mrb[0].mxu0
    %v865 = vpop.f32.mrb[0].mxu0
    %v866 = vadd.f32 0.0, %v865
    %v867 = vpop.f32.mrb[0].mxu0
    %868 = vmatprep.mubr.bf16.mxu0 0
    %869 = vmatmul.mubr.bf16.gmra.mrb[0].mxu0 %v505
    %v870 = vpop.f32.mrb[0].mxu0
    %v871 = vadd.f32 0.0, %v870
    %v872 = vpop.f32.mrb[0].mxu0
    %v873 = vpop.f32.mrb[0].mxu0
    %v874 = vadd.f32 0.0, %v873
    %v875 = vpop.f32.mrb[0].mxu0
    %876 = vmatprep.mubr.bf16.mxu0 0
    %877 = vmatmul.mubr.bf16.gmra.mrb[0].mxu0 %v506
    %v878 = vpop.f32.mrb[0].mxu0
    %v879 = vadd.f32 0.0, %v878
    %v880 = vpop.f32.mrb[0].mxu0
    %v881 = vpop.f32.mrb[0].mxu0
    %v882 = vadd.f32 0.0, %v881
    %v883 = vpop.f32.mrb[0].mxu0
    %884 = vdwg.mxu0
    %886 = vset.pattern.permute.xlu0 0
    %887 = vperm.xlu0 %886, %v652
    %v888 = vpop.permute.xlu0 %887
    %891 = vset.pattern.permute.xlu0 0
    %892 = vperm.xlu0 %891, %v653
    %v893 = vpop.permute.xlu0 %892
    %896 = vset.pattern.permute.xlu0 0
    %897 = vperm.xlu0 %896, %v654
    %v898 = vpop.permute.xlu0 %897
    %901 = vset.pattern.permute.xlu0 0
    %902 = vperm.xlu0 %901, %v655
    %v903 = vpop.permute.xlu0 %902
    %906 = vset.pattern.permute.xlu0 0
    %907 = vperm.xlu0 %906, %v656
    %v908 = vpop.permute.xlu0 %907
    %911 = vset.pattern.permute.xlu0 0
    %912 = vperm.xlu0 %911, %v657
    %v913 = vpop.permute.xlu0 %912
    %916 = vset.pattern.permute.xlu0 0
    %917 = vperm.xlu0 %916, %v658
    %v918 = vpop.permute.xlu0 %917
    %921 = vset.pattern.permute.xlu0 0
    %922 = vperm.xlu0 %921, %v659
    %v923 = vpop.permute.xlu0 %922
    %926 = vset.pattern.permute.xlu0 0
    %927 = vperm.xlu0 %926, %v660
    %v928 = vpop.permute.xlu0 %927
    %931 = vset.pattern.permute.xlu0 0
    %932 = vperm.xlu0 %931, %v661
    %v933 = vpop.permute.xlu0 %932
    %936 = vset.pattern.permute.xlu0 0
    %937 = vperm.xlu0 %936, %v662
    %v938 = vpop.permute.xlu0 %937
    %941 = vset.pattern.permute.xlu0 0
    %942 = vperm.xlu0 %941, %v663
    %v943 = vpop.permute.xlu0 %942
    %946 = vset.pattern.permute.xlu0 0
    %947 = vperm.xlu0 %946, %v664
    %v948 = vpop.permute.xlu0 %947
    %951 = vset.pattern.permute.xlu0 0
    %952 = vperm.xlu0 %951, %v665
    %v953 = vpop.permute.xlu0 %952
    %956 = vset.pattern.permute.xlu0 0
    %957 = vperm.xlu0 %956, %v666
    %v958 = vpop.permute.xlu0 %957
    %961 = vset.pattern.permute.xlu0 0
    %962 = vperm.xlu0 %961, %v667
    %v963 = vpop.permute.xlu0 %962
    %v965 = vmul.f32 %v888, %v823
    %v966 = vmul.f32 %v893, %v826
    %v967 = vmul.f32 %v898, %v831
    %v968 = vmul.f32 %v903, %v834
    %v969 = vmul.f32 %v908, %v839
    %v970 = vmul.f32 %v913, %v842
    %v971 = vmul.f32 %v918, %v847
    %v972 = vmul.f32 %v923, %v850
    %v973 = vmul.f32 %v928, %v855
    %v974 = vmul.f32 %v933, %v858
    %v975 = vmul.f32 %v938, %v863
    %v976 = vmul.f32 %v943, %v866
    %v977 = vmul.f32 %v948, %v871
    %v978 = vmul.f32 %v953, %v874
    %v979 = vmul.f32 %v958, %v879
    %v980 = vmul.f32 %v963, %v882
    %v981 = vadd.f32 %v965, %v764
    %v982 = vadd.f32 %v966, %v765
    %v983 = vadd.f32 %v967, %v766
    %v984 = vadd.f32 %v968, %v767
    %v985 = vadd.f32 %v969, %v768
    %v986 = vadd.f32 %v970, %v769
    %v987 = vadd.f32 %v971, %v770
    %v988 = vadd.f32 %v972, %v771
    %v989 = vadd.f32 %v973, %v772
    %v990 = vadd.f32 %v974, %v773
    %v991 = vadd.f32 %v975, %v774
    %v992 = vadd.f32 %v976, %v775
    %v993 = vadd.f32 %v977, %v776
    %v994 = vadd.f32 %v978, %v777
    %v995 = vadd.f32 %v979, %v778
    %v996 = vadd.f32 %v980, %v779
    %v997 = vpack.c.bf16 %v982, %v981
    %v998 = vpack.c.bf16 %v984, %v983
    %v999 = vpack.c.bf16 %v986, %v985
    %v1000 = vpack.c.bf16 %v988, %v987
    %v1001 = vpack.c.bf16 %v990, %v989
    %v1002 = vpack.c.bf16 %v992, %v991
    %v1003 = vpack.c.bf16 %v994, %v993
    %v1004 = vpack.c.bf16 %v996, %v995
    %1005 = vmatprep.subr.bf16.mxu0 0
    %1006 = vmatpush1.bf16.msra.mxu0 %v997
    %1007 = vmatprep.subr.bf16.mxu0 0
    %1008 = vmatpush1.bf16.msra.mxu0 %v998
    %1009 = vmatprep.subr.bf16.mxu0 0
    %1010 = vmatpush1.bf16.msra.mxu0 %v999
    %1011 = vmatprep.subr.bf16.mxu0 0
    %1012 = vmatpush1.bf16.msra.mxu0 %v1000
    %1013 = vmatprep.subr.bf16.mxu0 0
    %1014 = vmatpush1.bf16.msra.mxu0 %v1001
    %1015 = vmatprep.subr.bf16.mxu0 0
    %1016 = vmatpush1.bf16.msra.mxu0 %v1002
    %1017 = vmatprep.subr.bf16.mxu0 0
    %1018 = vmatpush1.bf16.msra.mxu0 %v1003
    %1019 = vmatprep.subr.bf16.mxu0 0
    %1020 = vmatpush1.bf16.msra.mxu0 %v1004
    %1021 = vmatprep.subr.bf16.mxu0 0
    %1022 = vmatpush1.bf16.msra.mxu0 0
    %1023 = vmatprep.subr.bf16.mxu0 0
    %1024 = vmatpush1.bf16.msra.mxu0 0
    %1025 = vmatprep.subr.bf16.mxu0 0
    %1026 = vmatpush1.bf16.msra.mxu0 0
    %1027 = vmatprep.subr.bf16.mxu0 0
    %1028 = vmatpush1.bf16.msra.mxu0 0
    %1029 = vmatprep.subr.bf16.mxu0 0
    %1030 = vmatpush1.bf16.msra.mxu0 0
    %1031 = vmatprep.subr.bf16.mxu0 0
    %1032 = vmatpush1.bf16.msra.mxu0 0
    %1033 = vmatprep.subr.bf16.mxu0 0
    %1034 = vmatpush1.bf16.msra.mxu0 0
    %1035 = vmatprep.subr.bf16.mxu0 0
    %1036 = vmatpush1.bf16.msra.mxu0 0
    %1037 = vmatprep.mubr.bf16.mxu0 0
    %1038 = vmatmul.mubr.bf16.gmra.mrb[0].mxu0 %v499
    %v1039 = vpop.f32.mrb[0].mxu0
    %v1040 = vadd.f32 0.0, %v1039
    %v1041 = vpop.f32.mrb[0].mxu0
    %v1042 = vpop.f32.mrb[0].mxu0
    %v1043 = vadd.f32 0.0, %v1042
    %v1044 = vpop.f32.mrb[0].mxu0
    %1045 = vmatprep.mubr.bf16.mxu0 0
    %1046 = vmatmul.mubr.bf16.gmra.mrb[0].mxu0 %v500
    %v1047 = vpop.f32.mrb[0].mxu0
    %v1048 = vadd.f32 0.0, %v1047
    %v1049 = vpop.f32.mrb[0].mxu0
    %v1050 = vpop.f32.mrb[0].mxu0
    %v1051 = vadd.f32 0.0, %v1050
    %v1052 = vpop.f32.mrb[0].mxu0
    %1053 = vmatprep.mubr.bf16.mxu0 0
    %1054 = vmatmul.mubr.bf16.gmra.mrb[0].mxu0 %v501
    %v1055 = vpop.f32.mrb[0].mxu0
    %v1056 = vadd.f32 0.0, %v1055
    %v1057 = vpop.f32.mrb[0].mxu0
    %v1058 = vpop.f32.mrb[0].mxu0
    %v1059 = vadd.f32 0.0, %v1058
    %v1060 = vpop.f32.mrb[0].mxu0
    %1061 = vmatprep.mubr.bf16.mxu0 0
    %1062 = vmatmul.mubr.bf16.gmra.mrb[0].mxu0 %v502
    %v1063 = vpop.f32.mrb[0].mxu0
    %v1064 = vadd.f32 0.0, %v1063
    %v1065 = vpop.f32.mrb[0].mxu0
    %v1066 = vpop.f32.mrb[0].mxu0
    %v1067 = vadd.f32 0.0, %v1066
    %v1068 = vpop.f32.mrb[0].mxu0
    %1069 = vmatprep.mubr.bf16.mxu0 0
    %1070 = vmatmul.mubr.bf16.gmra.mrb[0].mxu0 %v503
    %v1071 = vpop.f32.mrb[0].mxu0
    %v1072 = vadd.f32 0.0, %v1071
    %v1073 = vpop.f32.mrb[0].mxu0
    %v1074 = vpop.f32.mrb[0].mxu0
    %v1075 = vadd.f32 0.0, %v1074
    %v1076 = vpop.f32.mrb[0].mxu0
    %1077 = vmatprep.mubr.bf16.mxu0 0
    %1078 = vmatmul.mubr.bf16.gmra.mrb[0].mxu0 %v504
    %v1079 = vpop.f32.mrb[0].mxu0
    %v1080 = vadd.f32 0.0, %v1079
    %v1081 = vpop.f32.mrb[0].mxu0
    %v1082 = vpop.f32.mrb[0].mxu0
    %v1083 = vadd.f32 0.0, %v1082
    %v1084 = vpop.f32.mrb[0].mxu0
    %1085 = vmatprep.mubr.bf16.mxu0 0
    %1086 = vmatmul.mubr.bf16.gmra.mrb[0].mxu0 %v505
    %v1087 = vpop.f32.mrb[0].mxu0
    %v1088 = vadd.f32 0.0, %v1087
    %v1089 = vpop.f32.mrb[0].mxu0
    %v1090 = vpop.f32.mrb[0].mxu0
    %v1091 = vadd.f32 0.0, %v1090
    %v1092 = vpop.f32.mrb[0].mxu0
    %1093 = vmatprep.mubr.bf16.mxu0 0
    %1094 = vmatmul.mubr.bf16.gmra.mrb[0].mxu0 %v506
    %v1095 = vpop.f32.mrb[0].mxu0
    %v1096 = vadd.f32 0.0, %v1095
    %v1097 = vpop.f32.mrb[0].mxu0
    %v1098 = vpop.f32.mrb[0].mxu0
    %v1099 = vadd.f32 0.0, %v1098
    %v1100 = vpop.f32.mrb[0].mxu0
    %1101 = vdwg.mxu0
    %v1102 = vmul.f32 %v888, %v1040
    %v1103 = vmul.f32 %v893, %v1043
    %v1104 = vmul.f32 %v898, %v1048
    %v1105 = vmul.f32 %v903, %v1051
    %v1106 = vmul.f32 %v908, %v1056
    %v1107 = vmul.f32 %v913, %v1059
    %v1108 = vmul.f32 %v918, %v1064
    %v1109 = vmul.f32 %v923, %v1067
    %v1110 = vmul.f32 %v928, %v1072
    %v1111 = vmul.f32 %v933, %v1075
    %v1112 = vmul.f32 %v938, %v1080
    %v1113 = vmul.f32 %v943, %v1083
    %v1114 = vmul.f32 %v948, %v1088
    %v1115 = vmul.f32 %v953, %v1091
    %v1116 = vmul.f32 %v958, %v1096
    %v1117 = vmul.f32 %v963, %v1099
    %v1118 = vadd.f32 %v1102, %v764
    %v1119 = vadd.f32 %v1103, %v765
    %v1120 = vadd.f32 %v1104, %v766
    %v1121 = vadd.f32 %v1105, %v767
    %v1122 = vadd.f32 %v1106, %v768
    %v1123 = vadd.f32 %v1107, %v769
    %v1124 = vadd.f32 %v1108, %v770
    %v1125 = vadd.f32 %v1109, %v771
    %v1126 = vadd.f32 %v1110, %v772
    %v1127 = vadd.f32 %v1111, %v773
    %v1128 = vadd.f32 %v1112, %v774
    %v1129 = vadd.f32 %v1113, %v775
    %v1130 = vadd.f32 %v1114, %v776
    %v1131 = vadd.f32 %v1115, %v777
    %v1132 = vadd.f32 %v1116, %v778
    %v1133 = vadd.f32 %v1117, %v779
    %v1134 = vpack.c.bf16 %v1119, %v1118
    %v1135 = vpack.c.bf16 %v1121, %v1120
    %v1136 = vpack.c.bf16 %v1123, %v1122
    %v1137 = vpack.c.bf16 %v1125, %v1124
    %v1138 = vpack.c.bf16 %v1127, %v1126
    %v1139 = vpack.c.bf16 %v1129, %v1128
    %v1140 = vpack.c.bf16 %v1131, %v1130
    %v1141 = vpack.c.bf16 %v1133, %v1132
    %1142 = vmatprep.subr.bf16.mxu0 0
    %1143 = vmatpush1.bf16.msra.mxu0 %v1134
    %1144 = vmatprep.subr.bf16.mxu0 0
    %1145 = vmatpush1.bf16.msra.mxu0 %v1135
    %1146 = vmatprep.subr.bf16.mxu0 0
    %1147 = vmatpush1.bf16.msra.mxu0 %v1136
    %1148 = vmatprep.subr.bf16.mxu0 0
    %1149 = vmatpush1.bf16.msra.mxu0 %v1137
    %1150 = vmatprep.subr.bf16.mxu0 0
    %1151 = vmatpush1.bf16.msra.mxu0 %v1138
    %1152 = vmatprep.subr.bf16.mxu0 0
    %1153 = vmatpush1.bf16.msra.mxu0 %v1139
    %1154 = vmatprep.subr.bf16.mxu0 0
    %1155 = vmatpush1.bf16.msra.mxu0 %v1140
    %1156 = vmatprep.subr.bf16.mxu0 0
    %1157 = vmatpush1.bf16.msra.mxu0 %v1141
    %1158 = vmatprep.subr.bf16.mxu0 0
    %1159 = vmatpush1.bf16.msra.mxu0 0
    %1160 = vmatprep.subr.bf16.mxu0 0
    %1161 = vmatpush1.bf16.msra.mxu0 0
    %1162 = vmatprep.subr.bf16.mxu0 0
    %1163 = vmatpush1.bf16.msra.mxu0 0
    %1164 = vmatprep.subr.bf16.mxu0 0
    %1165 = vmatpush1.bf16.msra.mxu0 0
    %1166 = vmatprep.subr.bf16.mxu0 0
    %1167 = vmatpush1.bf16.msra.mxu0 0
    %1168 = vmatprep.subr.bf16.mxu0 0
    %1169 = vmatpush1.bf16.msra.mxu0 0
    %1170 = vmatprep.subr.bf16.mxu0 0
    %1171 = vmatpush1.bf16.msra.mxu0 0
    %1172 = vmatprep.subr.bf16.mxu0 0
    %1173 = vmatpush1.bf16.msra.mxu0 0
    %1174 = vmatprep.mubr.bf16.mxu0 0
    %1175 = vmatmul.mubr.bf16.gmra.mrb[0].mxu0 %v499
    %v1176 = vpop.f32.mrb[0].mxu0
    %v1177 = vadd.f32 0.0, %v1176
    %v1178 = vpop.f32.mrb[0].mxu0
    %v1179 = vpop.f32.mrb[0].mxu0
    %v1180 = vadd.f32 0.0, %v1179
    %v1181 = vpop.f32.mrb[0].mxu0
    %1182 = vmatprep.mubr.bf16.mxu0 0
    %1183 = vmatmul.mubr.bf16.gmra.mrb[0].mxu0 %v500
    %v1184 = vpop.f32.mrb[0].mxu0
    %v1185 = vadd.f32 0.0, %v1184
    %v1186 = vpop.f32.mrb[0].mxu0
    %v1187 = vpop.f32.mrb[0].mxu0
    %v1188 = vadd.f32 0.0, %v1187
    %v1189 = vpop.f32.mrb[0].mxu0
    %1190 = vmatprep.mubr.bf16.mxu0 0
    %1191 = vmatmul.mubr.bf16.gmra.mrb[0].mxu0 %v501
    %v1192 = vpop.f32.mrb[0].mxu0
    %v1193 = vadd.f32 0.0, %v1192
    %v1194 = vpop.f32.mrb[0].mxu0
    %v1195 = vpop.f32.mrb[0].mxu0
    %v1196 = vadd.f32 0.0, %v1195
    %v1197 = vpop.f32.mrb[0].mxu0
    %1198 = vmatprep.mubr.bf16.mxu0 0
    %1199 = vmatmul.mubr.bf16.gmra.mrb[0].mxu0 %v502
    %v1200 = vpop.f32.mrb[0].mxu0
    %v1201 = vadd.f32 0.0, %v1200
    %v1202 = vpop.f32.mrb[0].mxu0
    %v1203 = vpop.f32.mrb[0].mxu0
    %v1204 = vadd.f32 0.0, %v1203
    %v1205 = vpop.f32.mrb[0].mxu0
    %1206 = vmatprep.mubr.bf16.mxu0 0
    %1207 = vmatmul.mubr.bf16.gmra.mrb[0].mxu0 %v503
    %v1208 = vpop.f32.mrb[0].mxu0
    %v1209 = vadd.f32 0.0, %v1208
    %v1210 = vpop.f32.mrb[0].mxu0
    %v1211 = vpop.f32.mrb[0].mxu0
    %v1212 = vadd.f32 0.0, %v1211
    %v1213 = vpop.f32.mrb[0].mxu0
    %1214 = vmatprep.mubr.bf16.mxu0 0
    %1215 = vmatmul.mubr.bf16.gmra.mrb[0].mxu0 %v504
    %v1216 = vpop.f32.mrb[0].mxu0
    %v1217 = vadd.f32 0.0, %v1216
    %v1218 = vpop.f32.mrb[0].mxu0
    %v1219 = vpop.f32.mrb[0].mxu0
    %v1220 = vadd.f32 0.0, %v1219
    %v1221 = vpop.f32.mrb[0].mxu0
    %1222 = vmatprep.mubr.bf16.mxu0 0
    %1223 = vmatmul.mubr.bf16.gmra.mrb[0].mxu0 %v505
    %v1224 = vpop.f32.mrb[0].mxu0
    %v1225 = vadd.f32 0.0, %v1224
    %v1226 = vpop.f32.mrb[0].mxu0
    %v1227 = vpop.f32.mrb[0].mxu0
    %v1228 = vadd.f32 0.0, %v1227
    %v1229 = vpop.f32.mrb[0].mxu0
    %1230 = vmatprep.mubr.bf16.mxu0 0
    %1231 = vmatmul.mubr.bf16.gmra.mrb[0].mxu0 %v506
    %v1232 = vpop.f32.mrb[0].mxu0
    %v1233 = vadd.f32 0.0, %v1232
    %v1234 = vpop.f32.mrb[0].mxu0
    %v1235 = vpop.f32.mrb[0].mxu0
    %v1236 = vadd.f32 0.0, %v1235
    %v1237 = vpop.f32.mrb[0].mxu0
    %1238 = vdwg.mxu0
    %v1239 = vmul.f32 %v888, %v1177
    %v1240 = vmul.f32 %v893, %v1180
    %v1241 = vmul.f32 %v898, %v1185
    %v1242 = vmul.f32 %v903, %v1188
    %v1243 = vmul.f32 %v908, %v1193
    %v1244 = vmul.f32 %v913, %v1196
    %v1245 = vmul.f32 %v918, %v1201
    %v1246 = vmul.f32 %v923, %v1204
    %v1247 = vmul.f32 %v928, %v1209
    %v1248 = vmul.f32 %v933, %v1212
    %v1249 = vmul.f32 %v938, %v1217
    %v1250 = vmul.f32 %v943, %v1220
    %v1251 = vmul.f32 %v948, %v1225
    %v1252 = vmul.f32 %v953, %v1228
    %v1253 = vmul.f32 %v958, %v1233
    %v1254 = vmul.f32 %v963, %v1236
    %v1255 = vadd.f32 %v1239, %v764
    %v1256 = vadd.f32 %v1240, %v765
    %v1257 = vadd.f32 %v1241, %v766
    %v1258 = vadd.f32 %v1242, %v767
    %v1259 = vadd.f32 %v1243, %v768
    %v1260 = vadd.f32 %v1244, %v769
    %v1261 = vadd.f32 %v1245, %v770
    %v1262 = vadd.f32 %v1246, %v771
    %v1263 = vadd.f32 %v1247, %v772
    %v1264 = vadd.f32 %v1248, %v773
    %v1265 = vadd.f32 %v1249, %v774
    %v1266 = vadd.f32 %v1250, %v775
    %v1267 = vadd.f32 %v1251, %v776
    %v1268 = vadd.f32 %v1252, %v777
    %v1269 = vadd.f32 %v1253, %v778
    %v1270 = vadd.f32 %v1254, %v779
    %v1271 = vpack.c.bf16 %v1256, %v1255
    %v1272 = vpack.c.bf16 %v1258, %v1257
    %v1273 = vpack.c.bf16 %v1260, %v1259
    %v1274 = vpack.c.bf16 %v1262, %v1261
    %v1275 = vpack.c.bf16 %v1264, %v1263
    %v1276 = vpack.c.bf16 %v1266, %v1265
    %v1277 = vpack.c.bf16 %v1268, %v1267
    %v1278 = vpack.c.bf16 %v1270, %v1269
    %1279 = vmatprep.subr.bf16.mxu0 0
    %1280 = vmatpush1.bf16.msra.mxu0 %v1271
    %1281 = vmatprep.subr.bf16.mxu0 0
    %1282 = vmatpush1.bf16.msra.mxu0 %v1272
    %1283 = vmatprep.subr.bf16.mxu0 0
    %1284 = vmatpush1.bf16.msra.mxu0 %v1273
    %1285 = vmatprep.subr.bf16.mxu0 0
    %1286 = vmatpush1.bf16.msra.mxu0 %v1274
    %1287 = vmatprep.subr.bf16.mxu0 0
    %1288 = vmatpush1.bf16.msra.mxu0 %v1275
    %1289 = vmatprep.subr.bf16.mxu0 0
    %1290 = vmatpush1.bf16.msra.mxu0 %v1276
    %1291 = vmatprep.subr.bf16.mxu0 0
    %1292 = vmatpush1.bf16.msra.mxu0 %v1277
    %1293 = vmatprep.subr.bf16.mxu0 0
    %1294 = vmatpush1.bf16.msra.mxu0 %v1278
    %1295 = vmatprep.subr.bf16.mxu0 0
    %1296 = vmatpush1.bf16.msra.mxu0 0
    %1297 = vmatprep.subr.bf16.mxu0 0
    %1298 = vmatpush1.bf16.msra.mxu0 0
    %1299 = vmatprep.subr.bf16.mxu0 0
    %1300 = vmatpush1.bf16.msra.mxu0 0
    %1301 = vmatprep.subr.bf16.mxu0 0
    %1302 = vmatpush1.bf16.msra.mxu0 0
    %1303 = vmatprep.subr.bf16.mxu0 0
    %1304 = vmatpush1.bf16.msra.mxu0 0
    %1305 = vmatprep.subr.bf16.mxu0 0
    %1306 = vmatpush1.bf16.msra.mxu0 0
    %1307 = vmatprep.subr.bf16.mxu0 0
    %1308 = vmatpush1.bf16.msra.mxu0 0
    %1309 = vmatprep.subr.bf16.mxu0 0
    %1310 = vmatpush1.bf16.msra.mxu0 0
    %1311 = vmatprep.mubr.bf16.mxu0 0
    %1312 = vmatmul.mubr.bf16.gmra.mrb[0].mxu0 %v499
    %v1313 = vpop.f32.mrb[0].mxu0
    %v1314 = vadd.f32 0.0, %v1313
    %v1315 = vpop.f32.mrb[0].mxu0
    %v1316 = vpop.f32.mrb[0].mxu0
    %v1317 = vadd.f32 0.0, %v1316
    %v1318 = vpop.f32.mrb[0].mxu0
    %1319 = vmatprep.mubr.bf16.mxu0 0
    %1320 = vmatmul.mubr.bf16.gmra.mrb[0].mxu0 %v500
    %v1321 = vpop.f32.mrb[0].mxu0
    %v1322 = vadd.f32 0.0, %v1321
    %v1323 = vpop.f32.mrb[0].mxu0
    %v1324 = vpop.f32.mrb[0].mxu0
    %v1325 = vadd.f32 0.0, %v1324
    %v1326 = vpop.f32.mrb[0].mxu0
    %1327 = vmatprep.mubr.bf16.mxu0 0
    %1328 = vmatmul.mubr.bf16.gmra.mrb[0].mxu0 %v501
    %v1329 = vpop.f32.mrb[0].mxu0
    %v1330 = vadd.f32 0.0, %v1329
    %v1331 = vpop.f32.mrb[0].mxu0
    %v1332 = vpop.f32.mrb[0].mxu0
    %v1333 = vadd.f32 0.0, %v1332
    %v1334 = vpop.f32.mrb[0].mxu0
    %1335 = vmatprep.mubr.bf16.mxu0 0
    %1336 = vmatmul.mubr.bf16.gmra.mrb[0].mxu0 %v502
    %v1337 = vpop.f32.mrb[0].mxu0
    %v1338 = vadd.f32 0.0, %v1337
    %v1339 = vpop.f32.mrb[0].mxu0
    %v1340 = vpop.f32.mrb[0].mxu0
    %v1341 = vadd.f32 0.0, %v1340
    %v1342 = vpop.f32.mrb[0].mxu0
    %1343 = vmatprep.mubr.bf16.mxu0 0
    %1344 = vmatmul.mubr.bf16.gmra.mrb[0].mxu0 %v503
    %v1345 = vpop.f32.mrb[0].mxu0
    %v1346 = vadd.f32 0.0, %v1345
    %v1347 = vpop.f32.mrb[0].mxu0
    %v1348 = vpop.f32.mrb[0].mxu0
    %v1349 = vadd.f32 0.0, %v1348
    %v1350 = vpop.f32.mrb[0].mxu0
    %1351 = vmatprep.mubr.bf16.mxu0 0
    %1352 = vmatmul.mubr.bf16.gmra.mrb[0].mxu0 %v504
    %v1353 = vpop.f32.mrb[0].mxu0
    %v1354 = vadd.f32 0.0, %v1353
    %v1355 = vpop.f32.mrb[0].mxu0
    %v1356 = vpop.f32.mrb[0].mxu0
    %v1357 = vadd.f32 0.0, %v1356
    %v1358 = vpop.f32.mrb[0].mxu0
    %1359 = vmatprep.mubr.bf16.mxu0 0
    %1360 = vmatmul.mubr.bf16.gmra.mrb[0].mxu0 %v505
    %v1361 = vpop.f32.mrb[0].mxu0
    %v1362 = vadd.f32 0.0, %v1361
    %v1363 = vpop.f32.mrb[0].mxu0
    %v1364 = vpop.f32.mrb[0].mxu0
    %v1365 = vadd.f32 0.0, %v1364
    %v1366 = vpop.f32.mrb[0].mxu0
    %1367 = vmatprep.mubr.bf16.mxu0 0
    %1368 = vmatmul.mubr.bf16.gmra.mrb[0].mxu0 %v506
    %v1369 = vpop.f32.mrb[0].mxu0
    %v1370 = vadd.f32 0.0, %v1369
    %v1371 = vpop.f32.mrb[0].mxu0
    %v1372 = vpop.f32.mrb[0].mxu0
    %v1373 = vadd.f32 0.0, %v1372
    %v1374 = vpop.f32.mrb[0].mxu0
    %1375 = vdwg.mxu0
    %v1376 = vmul.f32 %v888, %v1314
    %v1377 = vmul.f32 %v893, %v1317
    %v1378 = vmul.f32 %v898, %v1322
    %v1379 = vmul.f32 %v903, %v1325
    %v1380 = vmul.f32 %v908, %v1330
    %v1381 = vmul.f32 %v913, %v1333
    %v1382 = vmul.f32 %v918, %v1338
    %v1383 = vmul.f32 %v923, %v1341
    %v1384 = vmul.f32 %v928, %v1346
    %v1385 = vmul.f32 %v933, %v1349
    %v1386 = vmul.f32 %v938, %v1354
    %v1387 = vmul.f32 %v943, %v1357
    %v1388 = vmul.f32 %v948, %v1362
    %v1389 = vmul.f32 %v953, %v1365
    %v1390 = vmul.f32 %v958, %v1370
    %v1391 = vmul.f32 %v963, %v1373
    %v1392 = vadd.f32 %v1376, %v764
    %v1393 = vadd.f32 %v1377, %v765
    %v1394 = vadd.f32 %v1378, %v766
    %v1395 = vadd.f32 %v1379, %v767
    %v1396 = vadd.f32 %v1380, %v768
    %v1397 = vadd.f32 %v1381, %v769
    %v1398 = vadd.f32 %v1382, %v770
    %v1399 = vadd.f32 %v1383, %v771
    %v1400 = vadd.f32 %v1384, %v772
    %v1401 = vadd.f32 %v1385, %v773
    %v1402 = vadd.f32 %v1386, %v774
    %v1403 = vadd.f32 %v1387, %v775
    %v1404 = vadd.f32 %v1388, %v776
    %v1405 = vadd.f32 %v1389, %v777
    %v1406 = vadd.f32 %v1390, %v778
    %v1407 = vadd.f32 %v1391, %v779
    %v1408 = vpack.c.bf16 %v1393, %v1392
    %v1409 = vpack.c.bf16 %v1395, %v1394
    %v1410 = vpack.c.bf16 %v1397, %v1396
    %v1411 = vpack.c.bf16 %v1399, %v1398
    %v1412 = vpack.c.bf16 %v1401, %v1400
    %v1413 = vpack.c.bf16 %v1403, %v1402
    %v1414 = vpack.c.bf16 %v1405, %v1404
    %v1415 = vpack.c.bf16 %v1407, %v1406
    %1416 = vmatprep.subr.bf16.mxu0 0
    %1417 = vmatpush1.bf16.msra.mxu0 %v1408
    %1418 = vmatprep.subr.bf16.mxu0 0
    %1419 = vmatpush1.bf16.msra.mxu0 %v1409
    %1420 = vmatprep.subr.bf16.mxu0 0
    %1421 = vmatpush1.bf16.msra.mxu0 %v1410
    %1422 = vmatprep.subr.bf16.mxu0 0
    %1423 = vmatpush1.bf16.msra.mxu0 %v1411
    %1424 = vmatprep.subr.bf16.mxu0 0
    %1425 = vmatpush1.bf16.msra.mxu0 %v1412
    %1426 = vmatprep.subr.bf16.mxu0 0
    %1427 = vmatpush1.bf16.msra.mxu0 %v1413
    %1428 = vmatprep.subr.bf16.mxu0 0
    %1429 = vmatpush1.bf16.msra.mxu0 %v1414
    %1430 = vmatprep.subr.bf16.mxu0 0
    %1431 = vmatpush1.bf16.msra.mxu0 %v1415
    %1432 = vmatprep.subr.bf16.mxu0 0
    %1433 = vmatpush1.bf16.msra.mxu0 0
    %1434 = vmatprep.subr.bf16.mxu0 0
    %1435 = vmatpush1.bf16.msra.mxu0 0
    %1436 = vmatprep.subr.bf16.mxu0 0
    %1437 = vmatpush1.bf16.msra.mxu0 0
    %1438 = vmatprep.subr.bf16.mxu0 0
    %1439 = vmatpush1.bf16.msra.mxu0 0
    %1440 = vmatprep.subr.bf16.mxu0 0
    %1441 = vmatpush1.bf16.msra.mxu0 0
    %1442 = vmatprep.subr.bf16.mxu0 0
    %1443 = vmatpush1.bf16.msra.mxu0 0
    %1444 = vmatprep.subr.bf16.mxu0 0
    %1445 = vmatpush1.bf16.msra.mxu0 0
    %1446 = vmatprep.subr.bf16.mxu0 0
    %1447 = vmatpush1.bf16.msra.mxu0 0
    %1448 = vmatprep.mubr.bf16.mxu0 0
    %1449 = vmatmul.mubr.bf16.gmra.mrb[0].mxu0 %v499
    %v1450 = vpop.f32.mrb[0].mxu0
    %v1451 = vadd.f32 0.0, %v1450
    %v1452 = vpop.f32.mrb[0].mxu0
    %v1453 = vpop.f32.mrb[0].mxu0
    %v1454 = vadd.f32 0.0, %v1453
    %v1455 = vpop.f32.mrb[0].mxu0
    %1456 = vmatprep.mubr.bf16.mxu0 0
    %1457 = vmatmul.mubr.bf16.gmra.mrb[0].mxu0 %v500
    %v1458 = vpop.f32.mrb[0].mxu0
    %v1459 = vadd.f32 0.0, %v1458
    %v1460 = vpop.f32.mrb[0].mxu0
    %v1461 = vpop.f32.mrb[0].mxu0
    %v1462 = vadd.f32 0.0, %v1461
    %v1463 = vpop.f32.mrb[0].mxu0
    %1464 = vmatprep.mubr.bf16.mxu0 0
    %1465 = vmatmul.mubr.bf16.gmra.mrb[0].mxu0 %v501
    %v1466 = vpop.f32.mrb[0].mxu0
    %v1467 = vadd.f32 0.0, %v1466
    %v1468 = vpop.f32.mrb[0].mxu0
    %v1469 = vpop.f32.mrb[0].mxu0
    %v1470 = vadd.f32 0.0, %v1469
    %v1471 = vpop.f32.mrb[0].mxu0
    %1472 = vmatprep.mubr.bf16.mxu0 0
    %1473 = vmatmul.mubr.bf16.gmra.mrb[0].mxu0 %v502
    %v1474 = vpop.f32.mrb[0].mxu0
    %v1475 = vadd.f32 0.0, %v1474
    %v1476 = vpop.f32.mrb[0].mxu0
    %v1477 = vpop.f32.mrb[0].mxu0
    %v1478 = vadd.f32 0.0, %v1477
    %v1479 = vpop.f32.mrb[0].mxu0
    %1480 = vmatprep.mubr.bf16.mxu0 0
    %1481 = vmatmul.mubr.bf16.gmra.mrb[0].mxu0 %v503
    %v1482 = vpop.f32.mrb[0].mxu0
    %v1483 = vadd.f32 0.0, %v1482
    %v1484 = vpop.f32.mrb[0].mxu0
    %v1485 = vpop.f32.mrb[0].mxu0
    %v1486 = vadd.f32 0.0, %v1485
    %v1487 = vpop.f32.mrb[0].mxu0
    %1488 = vmatprep.mubr.bf16.mxu0 0
    %1489 = vmatmul.mubr.bf16.gmra.mrb[0].mxu0 %v504
    %v1490 = vpop.f32.mrb[0].mxu0
    %v1491 = vadd.f32 0.0, %v1490
    %v1492 = vpop.f32.mrb[0].mxu0
    %v1493 = vpop.f32.mrb[0].mxu0
    %v1494 = vadd.f32 0.0, %v1493
    %v1495 = vpop.f32.mrb[0].mxu0
    %1496 = vmatprep.mubr.bf16.mxu0 0
    %1497 = vmatmul.mubr.bf16.gmra.mrb[0].mxu0 %v505
    %v1498 = vpop.f32.mrb[0].mxu0
    %v1499 = vadd.f32 0.0, %v1498
    %v1500 = vpop.f32.mrb[0].mxu0
    %v1501 = vpop.f32.mrb[0].mxu0
    %v1502 = vadd.f32 0.0, %v1501
    %v1503 = vpop.f32.mrb[0].mxu0
    %1504 = vmatprep.mubr.bf16.mxu0 0
    %1505 = vmatmul.mubr.bf16.gmra.mrb[0].mxu0 %v506
    %v1506 = vpop.f32.mrb[0].mxu0
    %v1507 = vadd.f32 0.0, %v1506
    %v1508 = vpop.f32.mrb[0].mxu0
    %v1509 = vpop.f32.mrb[0].mxu0
    %v1510 = vadd.f32 0.0, %v1509
    %v1511 = vpop.f32.mrb[0].mxu0
    %1512 = vdwg.mxu0
    %v1513 = vmul.f32 %v888, %v1451
    %v1514 = vmul.f32 %v893, %v1454
    %v1515 = vmul.f32 %v898, %v1459
    %v1516 = vmul.f32 %v903, %v1462
    %v1517 = vmul.f32 %v908, %v1467
    %v1518 = vmul.f32 %v913, %v1470
    %v1519 = vmul.f32 %v918, %v1475
    %v1520 = vmul.f32 %v923, %v1478
    %v1521 = vmul.f32 %v928, %v1483
    %v1522 = vmul.f32 %v933, %v1486
    %v1523 = vmul.f32 %v938, %v1491
    %v1524 = vmul.f32 %v943, %v1494
    %v1525 = vmul.f32 %v948, %v1499
    %v1526 = vmul.f32 %v953, %v1502
    %v1527 = vmul.f32 %v958, %v1507
    %v1528 = vmul.f32 %v963, %v1510
    %v1529 = vadd.f32 %v1513, %v764
    %v1530 = vadd.f32 %v1514, %v765
    %v1531 = vadd.f32 %v1515, %v766
    %v1532 = vadd.f32 %v1516, %v767
    %v1533 = vadd.f32 %v1517, %v768
    %v1534 = vadd.f32 %v1518, %v769
    %v1535 = vadd.f32 %v1519, %v770
    %v1536 = vadd.f32 %v1520, %v771
    %v1537 = vadd.f32 %v1521, %v772
    %v1538 = vadd.f32 %v1522, %v773
    %v1539 = vadd.f32 %v1523, %v774
    %v1540 = vadd.f32 %v1524, %v775
    %v1541 = vadd.f32 %v1525, %v776
    %v1542 = vadd.f32 %v1526, %v777
    %v1543 = vadd.f32 %v1527, %v778
    %v1544 = vadd.f32 %v1528, %v779
    %v1545 = vrsqrt.pop %v604
    %v1546 = vmul.f32 %v604, %v1545
    %vm1547 = vcmp.eq.f32.partialorder %v604, inf
    %v1548 = vsel %vm1547, %v604, %v1546
    %vm1549 = vcmp.eq.f32.partialorder %v604, 0.0
    %v1550 = vand.u32 %v604, 2147483648
    %v1551 = vsel %vm1549, %v1550, %v1548
    %v1552 = vrsqrt.pop %v605
    %v1553 = vmul.f32 %v605, %v1552
    %vm1554 = vcmp.eq.f32.partialorder %v605, inf
    %v1555 = vsel %vm1554, %v605, %v1553
    %vm1556 = vcmp.eq.f32.partialorder %v605, 0.0
    %v1557 = vand.u32 %v605, 2147483648
    %v1558 = vsel %vm1556, %v1557, %v1555
    %v1559 = vrsqrt.pop %v606
    %v1560 = vmul.f32 %v606, %v1559
    %vm1561 = vcmp.eq.f32.partialorder %v606, inf
    %v1562 = vsel %vm1561, %v606, %v1560
    %vm1563 = vcmp.eq.f32.partialorder %v606, 0.0
    %v1564 = vand.u32 %v606, 2147483648
    %v1565 = vsel %vm1563, %v1564, %v1562
    %v1566 = vrsqrt.pop %v607
    %v1567 = vmul.f32 %v607, %v1566
    %vm1568 = vcmp.eq.f32.partialorder %v607, inf
    %v1569 = vsel %vm1568, %v607, %v1567
    %vm1570 = vcmp.eq.f32.partialorder %v607, 0.0
    %v1571 = vand.u32 %v607, 2147483648
    %v1572 = vsel %vm1570, %v1571, %v1569
    %v1573 = vrsqrt.pop %v608
    %v1574 = vmul.f32 %v608, %v1573
    %vm1575 = vcmp.eq.f32.partialorder %v608, inf
    %v1576 = vsel %vm1575, %v608, %v1574
    %vm1577 = vcmp.eq.f32.partialorder %v608, 0.0
    %v1578 = vand.u32 %v608, 2147483648
    %v1579 = vsel %vm1577, %v1578, %v1576
    %v1580 = vrsqrt.pop %v609
    %v1581 = vmul.f32 %v609, %v1580
    %vm1582 = vcmp.eq.f32.partialorder %v609, inf
    %v1583 = vsel %vm1582, %v609, %v1581
    %vm1584 = vcmp.eq.f32.partialorder %v609, 0.0
    %v1585 = vand.u32 %v609, 2147483648
    %v1586 = vsel %vm1584, %v1585, %v1583
    %v1587 = vrsqrt.pop %v610
    %v1588 = vmul.f32 %v610, %v1587
    %vm1589 = vcmp.eq.f32.partialorder %v610, inf
    %v1590 = vsel %vm1589, %v610, %v1588
    %vm1591 = vcmp.eq.f32.partialorder %v610, 0.0
    %v1592 = vand.u32 %v610, 2147483648
    %v1593 = vsel %vm1591, %v1592, %v1590
    %v1594 = vrsqrt.pop %v611
    %v1595 = vmul.f32 %v611, %v1594
    %vm1596 = vcmp.eq.f32.partialorder %v611, inf
    %v1597 = vsel %vm1596, %v611, %v1595
    %vm1598 = vcmp.eq.f32.partialorder %v611, 0.0
    %v1599 = vand.u32 %v611, 2147483648
    %v1600 = vsel %vm1598, %v1599, %v1597
    %v1601 = vrsqrt.pop %v612
    %v1602 = vmul.f32 %v612, %v1601
    %vm1603 = vcmp.eq.f32.partialorder %v612, inf
    %v1604 = vsel %vm1603, %v612, %v1602
    %vm1605 = vcmp.eq.f32.partialorder %v612, 0.0
    %v1606 = vand.u32 %v612, 2147483648
    %v1607 = vsel %vm1605, %v1606, %v1604
    %v1608 = vrsqrt.pop %v613
    %v1609 = vmul.f32 %v613, %v1608
    %vm1610 = vcmp.eq.f32.partialorder %v613, inf
    %v1611 = vsel %vm1610, %v613, %v1609
    %vm1612 = vcmp.eq.f32.partialorder %v613, 0.0
    %v1613 = vand.u32 %v613, 2147483648
    %v1614 = vsel %vm1612, %v1613, %v1611
    %v1615 = vrsqrt.pop %v614
    %v1616 = vmul.f32 %v614, %v1615
    %vm1617 = vcmp.eq.f32.partialorder %v614, inf
    %v1618 = vsel %vm1617, %v614, %v1616
    %vm1619 = vcmp.eq.f32.partialorder %v614, 0.0
    %v1620 = vand.u32 %v614, 2147483648
    %v1621 = vsel %vm1619, %v1620, %v1618
    %v1622 = vrsqrt.pop %v615
    %v1623 = vmul.f32 %v615, %v1622
    %vm1624 = vcmp.eq.f32.partialorder %v615, inf
    %v1625 = vsel %vm1624, %v615, %v1623
    %vm1626 = vcmp.eq.f32.partialorder %v615, 0.0
    %v1627 = vand.u32 %v615, 2147483648
    %v1628 = vsel %vm1626, %v1627, %v1625
    %v1629 = vrsqrt.pop %v616
    %v1630 = vmul.f32 %v616, %v1629
    %vm1631 = vcmp.eq.f32.partialorder %v616, inf
    %v1632 = vsel %vm1631, %v616, %v1630
    %vm1633 = vcmp.eq.f32.partialorder %v616, 0.0
    %v1634 = vand.u32 %v616, 2147483648
    %v1635 = vsel %vm1633, %v1634, %v1632
    %v1636 = vrsqrt.pop %v617
    %v1637 = vmul.f32 %v617, %v1636
    %vm1638 = vcmp.eq.f32.partialorder %v617, inf
    %v1639 = vsel %vm1638, %v617, %v1637
    %vm1640 = vcmp.eq.f32.partialorder %v617, 0.0
    %v1641 = vand.u32 %v617, 2147483648
    %v1642 = vsel %vm1640, %v1641, %v1639
    %v1643 = vrsqrt.pop %v618
    %v1644 = vmul.f32 %v618, %v1643
    %vm1645 = vcmp.eq.f32.partialorder %v618, inf
    %v1646 = vsel %vm1645, %v618, %v1644
    %vm1647 = vcmp.eq.f32.partialorder %v618, 0.0
    %v1648 = vand.u32 %v618, 2147483648
    %v1649 = vsel %vm1647, %v1648, %v1646
    %v1650 = vrsqrt.pop %v619
    %v1651 = vmul.f32 %v619, %v1650
    %vm1652 = vcmp.eq.f32.partialorder %v619, inf
    %v1653 = vsel %vm1652, %v619, %v1651
    %vm1654 = vcmp.eq.f32.partialorder %v619, 0.0
    %v1655 = vand.u32 %v619, 2147483648
    %v1656 = vsel %vm1654, %v1655, %v1653
    %1658 = vset.pattern.permute.xlu0 0
    %1659 = vperm.xlu0 %1658, %v1551
    %v1660 = vpop.permute.xlu0 %1659
    %1663 = vset.pattern.permute.xlu0 0
    %1664 = vperm.xlu0 %1663, %v1558
    %v1665 = vpop.permute.xlu0 %1664
    %1668 = vset.pattern.permute.xlu0 0
    %1669 = vperm.xlu0 %1668, %v1565
    %v1670 = vpop.permute.xlu0 %1669
    %1673 = vset.pattern.permute.xlu0 0
    %1674 = vperm.xlu0 %1673, %v1572
    %v1675 = vpop.permute.xlu0 %1674
    %1678 = vset.pattern.permute.xlu0 0
    %1679 = vperm.xlu0 %1678, %v1579
    %v1680 = vpop.permute.xlu0 %1679
    %1683 = vset.pattern.permute.xlu0 0
    %1684 = vperm.xlu0 %1683, %v1586
    %v1685 = vpop.permute.xlu0 %1684
    %1688 = vset.pattern.permute.xlu0 0
    %1689 = vperm.xlu0 %1688, %v1593
    %v1690 = vpop.permute.xlu0 %1689
    %1693 = vset.pattern.permute.xlu0 0
    %1694 = vperm.xlu0 %1693, %v1600
    %v1695 = vpop.permute.xlu0 %1694
    %1698 = vset.pattern.permute.xlu0 0
    %1699 = vperm.xlu0 %1698, %v1607
    %v1700 = vpop.permute.xlu0 %1699
    %1703 = vset.pattern.permute.xlu0 0
    %1704 = vperm.xlu0 %1703, %v1614
    %v1705 = vpop.permute.xlu0 %1704
    %1708 = vset.pattern.permute.xlu0 0
    %1709 = vperm.xlu0 %1708, %v1621
    %v1710 = vpop.permute.xlu0 %1709
    %1713 = vset.pattern.permute.xlu0 0
    %1714 = vperm.xlu0 %1713, %v1628
    %v1715 = vpop.permute.xlu0 %1714
    %1718 = vset.pattern.permute.xlu0 0
    %1719 = vperm.xlu0 %1718, %v1635
    %v1720 = vpop.permute.xlu0 %1719
    %1723 = vset.pattern.permute.xlu0 0
    %1724 = vperm.xlu0 %1723, %v1642
    %v1725 = vpop.permute.xlu0 %1724
    %1728 = vset.pattern.permute.xlu0 0
    %1729 = vperm.xlu0 %1728, %v1649
    %v1730 = vpop.permute.xlu0 %1729
    %1733 = vset.pattern.permute.xlu0 0
    %1734 = vperm.xlu0 %1733, %v1656
    %v1735 = vpop.permute.xlu0 %1734
    %v1737 = vmul.f32 %v1660, %v1529
    %v1738 = vmul.f32 %v1665, %v1530
    %v1739 = vmul.f32 %v1670, %v1531
    %v1740 = vmul.f32 %v1675, %v1532
    %v1741 = vmul.f32 %v1680, %v1533
    %v1742 = vmul.f32 %v1685, %v1534
    %v1743 = vmul.f32 %v1690, %v1535
    %v1744 = vmul.f32 %v1695, %v1536
    %v1745 = vmul.f32 %v1700, %v1537
    %v1746 = vmul.f32 %v1705, %v1538
    %v1747 = vmul.f32 %v1710, %v1539
    %v1748 = vmul.f32 %v1715, %v1540
    %v1749 = vmul.f32 %v1720, %v1541
    %v1750 = vmul.f32 %v1725, %v1542
    %v1751 = vmul.f32 %v1730, %v1543
    %v1752 = vmul.f32 %v1735, %v1544
    %1753 = vst [vmem:[#allocation7] sm:$0xff] %v1737
    %1754 = vst [vmem:[#allocation7 + $0x8] sm:$0xff] %v1738
    %1755 = vst [vmem:[#allocation7 + $0x10] sm:$0xff] %v1739
    %1756 = vst [vmem:[#allocation7 + $0x18] sm:$0xff] %v1740
    %1757 = vst [vmem:[#allocation7 + $0x20] sm:$0xff] %v1741
    %1758 = vst [vmem:[#allocation7 + $0x28] sm:$0xff] %v1742
    %1759 = vst [vmem:[#allocation7 + $0x30] sm:$0xff] %v1743
    %1760 = vst [vmem:[#allocation7 + $0x38] sm:$0xff] %v1744
    %1761 = vst [vmem:[#allocation7 + $0x40] sm:$0xff] %v1745
    %1762 = vst [vmem:[#allocation7 + $0x48] sm:$0xff] %v1746
    %1763 = vst [vmem:[#allocation7 + $0x50] sm:$0xff] %v1747
    %1764 = vst [vmem:[#allocation7 + $0x58] sm:$0xff] %v1748
    %1765 = vst [vmem:[#allocation7 + $0x60] sm:$0xff] %v1749
    %1766 = vst [vmem:[#allocation7 + $0x68] sm:$0xff] %v1750
    %1767 = vst [vmem:[#allocation7 + $0x70] sm:$0xff] %v1751
    %1768 = vst [vmem:[#allocation7 + $0x78] sm:$0xff] %v1752
    // Predicated region
    $region60: #{tpu_custom_call.1} parent=1 // pred_check
      _
    $region61: #{tpu_custom_call.1} parent=1 // pred_check_branch
      %1770 = sbr.rel (0) target = $region63
    $region62: #{tpu_custom_call.1} parent=1 // pred_region
      %s1772 = ssub.s32 2048, 2048
      %1773 = vsyncadd [#allocation6], %s1772
      %s1774 = sshll.u32 [#allocation7], 4
      %s1775 = int_to_ptr.vmem [resolvable:$true] %s1774
      %1780 = dma.vmem_to_hbm [thread:$0]  %s1775, 2048, %s6, [#allocation6], 128, 128, 8
    $region63: #{tpu_custom_call.1} parent=1 // pred_fallthru
      _
    // Predicated region
    $region64: #{tpu_custom_call.1} parent=1 // pred_check
      _
    $region65: #{tpu_custom_call.1} parent=1 // pred_check_branch
      %1782 = sbr.rel (0) target = $region67
    $region66: #{tpu_custom_call.1} parent=1 // pred_region
      %1783 = dma.done [#allocation6], 2048
    $region67: #{tpu_custom_call.1} parent=1 // pred_fallthru
      _
    %1784 = vsyncpa [#allocation5], 1
    %1785 = vsyncpa [#allocation6], 1
  %1786 = vsyncmov [#allocation3]
  %s1787 = vpop.sfrf %1786
  %p1788 = scmp.eq.s32.totalorder %s1787, 0
  %p1789 = pneg %p1788
  %1791 = shalt.err (%p1789)

</llo_original>
